<compile_context>
chip_gen: v7x
topology: tpu7x:2x2x1
jax: 0.10.0
libtpu: 0.0.40
codegen_flags: <defaults>
</compile_context>

<pallas_src>
import functools

import jax
import jax.numpy as jnp
from jax import lax
from jax.experimental import pallas as pl
from jax.experimental.pallas import tpu as pltpu

NEG_MIN = float(jnp.finfo(jnp.float32).min)  # torch.finfo(float32).min
LANE = 128


def _round_up(x, m):
    return (x + m - 1) // m * m


# ----------------------------------------------------------------------------
# Parameter init (PyTorch shapes) and one-time packing into kernel layout.
# ----------------------------------------------------------------------------
def make_params(feature_dim, action_dim, hidden_dim, key):
    """Deterministic parameter init mirroring the PyTorch module's shapes."""
    ks = jax.random.split(key, 12)
    kH = 1.0 / jnp.sqrt(hidden_dim)

    def unif(k, shape, scale):
        return jax.random.uniform(k, shape, jnp.float32, -scale, scale)

    return dict(
        # GRUCell actor: weight_ih (3H, F), weight_hh (3H, H), biases (3H,)
        wih_a=unif(ks[0], (3 * hidden_dim, feature_dim), kH),
        whh_a=unif(ks[1], (3 * hidden_dim, hidden_dim), kH),
        bih_a=unif(ks[2], (3 * hidden_dim,), kH),
        bhh_a=unif(ks[3], (3 * hidden_dim,), kH),
        # GRUCell critic
        wih_c=unif(ks[4], (3 * hidden_dim, feature_dim), kH),
        whh_c=unif(ks[5], (3 * hidden_dim, hidden_dim), kH),
        bih_c=unif(ks[6], (3 * hidden_dim,), kH),
        bhh_c=unif(ks[7], (3 * hidden_dim,), kH),
        # ActionNet fc_action: (A, H), (A,)
        wpi=unif(ks[8], (action_dim, hidden_dim), kH),
        bpi=unif(ks[9], (action_dim,), kH),
        # ValueNet fc_value: (1, H), (1,)
        wv=unif(ks[10], (1, hidden_dim), kH),
        bv=unif(ks[11], (1,), kH),
    )


def pack_params(params, feature_dim, action_dim, hidden_dim):
    """One-time repack of PyTorch-layout params into the fused kernel layout."""
    H = hidden_dim
    A = action_dim
    GP = _round_up(H, LANE)          # padded per-gate / per-state lane width
    AP = _round_up(A, LANE)          # padded action lane width
    HEADW = AP + LANE                # policy logits group + value group
    BW = max(6 * GP, HEADW)          # bias-slab lane width

    def pad_cols(w, width):
        return jnp.pad(w, ((0, 0), (0, width - w.shape[1])))

    def pad_rows(w, height):
        return jnp.pad(w, ((0, height - w.shape[0]), (0, 0)))

    def gate_block(w_t):
        # (rows, 3H) -> (rows, 3*GP): each gate occupies a 128-aligned group.
        r = pad_cols(w_t[:, 0:H], GP)
        z = pad_cols(w_t[:, H:2 * H], GP)
        n = pad_cols(w_t[:, 2 * H:3 * H], GP)
        return jnp.concatenate([r, z, n], axis=1)

    # Fused input projection: cols [a_r a_z a_n | c_r c_z c_n], shape (F, 6*GP).
    w_in = jnp.concatenate(
        [gate_block(params["wih_a"].T), gate_block(params["wih_c"].T)], axis=1)

    # Dense per-cell hidden projections (no block-diagonal zeros): (GP, 3*GP).
    whh_a = pad_rows(gate_block(params["whh_a"].T), GP)
    whh_c = pad_rows(gate_block(params["whh_c"].T), GP)

    # Fused policy + value head: [ha || hc] -> [logits (AP) | value group (128)].
    w_head = jnp.zeros((2 * GP, HEADW), jnp.float32)
    w_head = w_head.at[:H, :A].set(params["wpi"].T)
    w_head = w_head.at[GP:GP + H, AP].set(params["wv"][0])

    # One bias slab (8 sublanes x BW lanes), f32:
    #   row 0: added to gi -> r/z columns get bih+bhh (pre-summed), n columns bih.
    #   row 1: bhh for the n gate only (added inside r * (gh_n + bhn)).
    #   row 2: head bias (bpi in logits columns, bv at lane AP).
    bih_a, bhh_a = params["bih_a"], params["bhh_a"]
    bih_c, bhh_c = params["bih_c"], params["bhh_c"]
    bias = jnp.zeros((8, BW), jnp.float32)
    bias = bias.at[0, 0 * GP:0 * GP + H].set(bih_a[0:H] + bhh_a[0:H])
    bias = bias.at[0, 1 * GP:1 * GP + H].set(bih_a[H:2 * H] + bhh_a[H:2 * H])
    bias = bias.at[0, 2 * GP:2 * GP + H].set(bih_a[2 * H:3 * H])
    bias = bias.at[0, 3 * GP:3 * GP + H].set(bih_c[0:H] + bhh_c[0:H])
    bias = bias.at[0, 4 * GP:4 * GP + H].set(bih_c[H:2 * H] + bhh_c[H:2 * H])
    bias = bias.at[0, 5 * GP:5 * GP + H].set(bih_c[2 * H:3 * H])
    bias = bias.at[1, 2 * GP:2 * GP + H].set(bhh_a[2 * H:3 * H])
    bias = bias.at[1, 5 * GP:5 * GP + H].set(bhh_c[2 * H:3 * H])
    bias = bias.at[2, 0:A].set(params["bpi"])
    bias = bias.at[2, AP].set(params["bv"][0])

    packed = dict(
        w_in=w_in.astype(jnp.bfloat16),
        whh_a=whh_a.astype(jnp.bfloat16),
        whh_c=whh_c.astype(jnp.bfloat16),
        w_head=w_head.astype(jnp.bfloat16),
        bias=bias,
    )
    dims = dict(F=feature_dim, H=H, A=A, GP=GP, AP=AP)
    return packed, dims


# ----------------------------------------------------------------------------
# The fused Pallas kernel (one grid step = one timestep of one batch tile).
# ----------------------------------------------------------------------------
def _policy_kernel(
    state_ref, obs_ref, mask_ref,
    w_in_ref, whh_a_ref, whh_c_ref, w_head_ref, bias_ref,
    out_ref, h_scratch,
    *, GP, AP, HEADW,
):
    t = pl.program_id(1)

    # At t == 0 load this batch tile's packed recurrent state into VMEM
    # scratch; it then persists across the whole "arbitrary" time axis.
    @pl.when(t == 0)
    def _():
        h_scratch[...] = state_ref[...]

    x = obs_ref[...]                                   # (TB, F)    f32
    h = h_scratch[...]                                 # (TB, 2*GP) f32

    # Input projection for both cells (bf16 MXU operands, f32 accumulation);
    # r/z columns of the bias row already contain bih + bhh.
    gi = jnp.dot(x.astype(jnp.bfloat16), w_in_ref[...],
                 preferred_element_type=jnp.float32) + bias_ref[0:1, 0:6 * GP]

    # Dense per-cell hidden projections (no block-diagonal zeros in VMEM).
    gh_a = jnp.dot(h[:, 0:GP].astype(jnp.bfloat16), whh_a_ref[...],
                   preferred_element_type=jnp.float32)
    gh_c = jnp.dot(h[:, GP:2 * GP].astype(jnp.bfloat16), whh_c_ref[...],
                   preferred_element_type=jnp.float32)

    def gru(gi_g, gh_g, bhn, h_prev):
        # All gate slices are 128-lane aligned groups (free vreg picks).
        r = jax.nn.sigmoid(gi_g[:, 0:GP] + gh_g[:, 0:GP])
        z = jax.nn.sigmoid(gi_g[:, GP:2 * GP] + gh_g[:, GP:2 * GP])
        n = jnp.tanh(gi_g[:, 2 * GP:3 * GP] + r * (gh_g[:, 2 * GP:3 * GP] + bhn))
        return (1.0 - z) * n + z * h_prev

    ha = gru(gi[:, 0:3 * GP], gh_a, bias_ref[1:2, 2 * GP:3 * GP], h[:, 0:GP])
    hc = gru(gi[:, 3 * GP:6 * GP], gh_c, bias_ref[1:2, 5 * GP:6 * GP],
             h[:, GP:2 * GP])

    h_new = jnp.concatenate([ha, hc], axis=1)          # (TB, 2*GP)
    h_scratch[...] = h_new                             # carry to next step

    # Fused policy + value head: logits in cols [0, AP), value in lane AP.
    head = jnp.dot(h_new.astype(jnp.bfloat16), w_head_ref[...],
                   preferred_element_type=jnp.float32) + bias_ref[2:3, 0:HEADW]

    mask = mask_ref[...] > 0.5
    # TODO(synk): guard against an all-masked action row if the env can emit one.
    logits = jnp.where(mask, head[:, 0:AP], NEG_MIN)

    # Exact masked softmax (f32 VPU/EUP): probs == exp(log_probs) identically.
    m = jnp.max(logits, axis=-1, keepdims=True)
    ex = jnp.exp(logits - m)
    logden = jnp.log(jnp.sum(ex, axis=-1, keepdims=True))
    logp = (logits - m) - logden
    probs = jnp.exp(logp)
    # CategoricalMasked.entropy(): -sum(where(mask, logits_norm * probs, 0))
    ent = -jnp.sum(jnp.where(mask, probs * logp, 0.0), axis=-1, keepdims=True)

    # Lane-dense output slab; every section is a 128-aligned full store.
    c_logits = 2 * GP
    c_probs = c_logits + AP
    c_logp = c_probs + AP
    c_ent = c_logp + AP
    c_val = c_ent + LANE
    out_ref[:, 0:2 * GP] = h_new
    out_ref[:, c_logits:c_logits + AP] = logits
    out_ref[:, c_probs:c_probs + AP] = probs
    out_ref[:, c_logp:c_logp + AP] = logp
    lane = lax.broadcasted_iota(jnp.int32, (ent.shape[0], LANE), 1)
    out_ref[:, c_ent:c_ent + LANE] = jnp.where(lane == 0, ent, 0.0)
    out_ref[:, c_val:c_val + LANE] = head[:, AP:HEADW]   # value in lane 0


# ----------------------------------------------------------------------------
# Wrappers.
# ----------------------------------------------------------------------------
def pack_state(states_gru, B, dims):
    """Accepts None, (h_a, h_c), or an already-packed (B, 2*GP) state."""
    H, GP = dims["H"], dims["GP"]
    if states_gru is None:
        return jnp.zeros((B, 2 * GP), jnp.float32)
    if isinstance(states_gru, (tuple, list)):
        h_a, h_c = states_gru
        st = jnp.zeros((B, 2 * GP), jnp.float32)
        st = st.at[:, :H].set(h_a.astype(jnp.float32))
        st = st.at[:, GP:GP + H].set(h_c.astype(jnp.float32))
        return st
    return states_gru.astype(jnp.float32)


def gru_rollout(obs_seq, packed, dims, state_packed=None, mask_seq=None):
    """Run T recurrent steps in ONE pallas_call (weights stay VMEM-resident).

    obs_seq: (T, B, ...) observations; mask_seq: optional (T, B, A) bool.
    Returns the (T, B, SLAB_W) output slab.
    """
    T, B = obs_seq.shape[0], obs_seq.shape[1]
    F, A = dims["F"], dims["A"]
    GP, AP = dims["GP"], dims["AP"]
    HEADW = AP + LANE
    SLAB_W = 2 * GP + 3 * AP + 2 * LANE

    feats = obs_seq.reshape(T, B, -1).astype(jnp.float32)
    assert feats.shape[-1] == F

    if state_packed is None:
        state_packed = jnp.zeros((B, 2 * GP), jnp.float32)

    if mask_seq is None:
        mask_f = jnp.zeros((T, B, AP), jnp.float32).at[:, :, :A].set(1.0)
    else:
        mask_f = jnp.zeros((T, B, AP), jnp.float32).at[:, :, :A].set(
            mask_seq.astype(jnp.float32))

    # Single batch tile at these sizes.  When scaling B, pick TILE_B as a
    # multiple of 8 (ideally 128/256) so the leading "parallel" axis shards
    # across v7x's 2 TensorCores; re-derive tiles for 64 MiB VMEM on v7x.
    TILE_B = B
    nb = B // TILE_B

    kernel = functools.partial(_policy_kernel, GP=GP, AP=AP, HEADW=HEADW)
    const = lambda b, t: (0, 0)   # weights: DMA'd once, VMEM-resident

    grid_spec = pltpu.PrefetchScalarGridSpec(
        num_scalar_prefetch=0,
        grid=(nb, T),
        in_specs=[
            pl.BlockSpec((TILE_B, 2 * GP), lambda b, t: (b, 0)),        # state
            pl.BlockSpec((None, TILE_B, F), lambda b, t: (t, b, 0)),    # obs
            pl.BlockSpec((None, TILE_B, AP), lambda b, t: (t, b, 0)),   # mask
            pl.BlockSpec(packed["w_in"].shape, const),
            pl.BlockSpec(packed["whh_a"].shape, const),
            pl.BlockSpec(packed["whh_c"].shape, const),
            pl.BlockSpec(packed["w_head"].shape, const),
            pl.BlockSpec(packed["bias"].shape, const),
        ],
        out_specs=pl.BlockSpec((None, TILE_B, SLAB_W), lambda b, t: (t, b, 0)),
        scratch_shapes=[pltpu.VMEM((TILE_B, 2 * GP), jnp.float32)],
    )

    return pl.pallas_call(
        kernel,
        out_shape=jax.ShapeDtypeStruct((T, B, SLAB_W), jnp.float32),
        grid_spec=grid_spec,
        compiler_params=pltpu.CompilerParams(
            dimension_semantics=("parallel", "arbitrary"),
            vmem_limit_bytes=32 * 1024 * 1024),
    )(state_packed, feats, mask_f,
      packed["w_in"], packed["whh_a"], packed["whh_c"],
      packed["w_head"], packed["bias"])


def unpack_slab(slab, dims):
    H, A, GP, AP = dims["H"], dims["A"], dims["GP"], dims["AP"]
    c_logits = 2 * GP
    c_probs = c_logits + AP
    c_logp = c_probs + AP
    c_ent = c_logp + AP
    c_val = c_ent + LANE
    state = slab[..., 0:2 * GP]
    return dict(
        state=state,
        hidden_actor=state[..., :H],
        hidden_critic=state[..., GP:GP + H],
        logits=slab[..., c_logits:c_logits + A],
        policy=slab[..., c_probs:c_probs + A],
        log_probs=slab[..., c_logp:c_logp + A],
        entropy=slab[..., c_ent],
        value=slab[..., c_val:c_val + 1],
    )


def gru_recurrent_actor_critic_forward(obs, packed, dims, states_gru=None,
                                       mask=None, sample_key=None):
    """Single-step forward matching GRURecurrentActorCriticPolicy.forward.

    Returns (action, policy, log_prob, entropy, value,
             [hidden_actor, hidden_critic], state_packed).
    `state_packed` can be fed back as `states_gru` on the next call so the
    padded recurrent state is never rebuilt.
    """
    B = obs.shape[0]
    state_packed = pack_state(states_gru, B, dims)
    mask_seq = None if mask is None else mask[None]
    slab = gru_rollout(obs[None], packed, dims, state_packed, mask_seq)[0]
    out = unpack_slab(slab, dims)

    # Categorical.sample() + log_prob(action) outside the kernel.
    # TODO(synk): in-kernel categorical sampling (Gumbel trick with
    # pltpu.prng_random_bits + lane argmax) is possible but kept outside.
    if sample_key is None:
        sample_key = jax.random.PRNGKey(42)
    action = jax.random.categorical(sample_key, out["logits"], axis=-1)
    log_prob = jnp.take_along_axis(out["log_probs"], action[:, None], axis=1)[:, 0]
    return (action, out["policy"], log_prob, out["entropy"], out["value"],
            [out["hidden_actor"], out["hidden_critic"]], out["state"])


# ----------------------------------------------------------------------------
# Pure-JAX reference (same bf16-MXU / f32-accum numerics) for validation.
# ----------------------------------------------------------------------------
def reference_forward(obs, params, hidden_dim, action_dim, states_gru, mask):
    B = obs.shape[0]
    x = obs.reshape(B, -1).astype(jnp.float32)
    if states_gru is None:
        ha = jnp.zeros((B, hidden_dim), jnp.float32)
        hc = jnp.zeros((B, hidden_dim), jnp.float32)
    else:
        ha, hc = states_gru

    def bdot(a, b):
        return jnp.dot(a.astype(jnp.bfloat16), b.astype(jnp.bfloat16),
                       preferred_element_type=jnp.float32)

    def cell(xv, hv, wih, whh, bih, bhh):
        gi = bdot(xv, wih.T) + bih
        gh = bdot(hv, whh.T) + bhh
        Hd = hidden_dim
        r = jax.nn.sigmoid(gi[:, :Hd] + gh[:, :Hd])
        z = jax.nn.sigmoid(gi[:, Hd:2 * Hd] + gh[:, Hd:2 * Hd])
        n = jnp.tanh(gi[:, 2 * Hd:] + r * gh[:, 2 * Hd:])
        return (1.0 - z) * n + z * hv

    ha_n = cell(x, ha, params["wih_a"], params["whh_a"],
                params["bih_a"], params["bhh_a"])
    hc_n = cell(x, hc, params["wih_c"], params["whh_c"],
                params["bih_c"], params["bhh_c"])

    logits = bdot(ha_n, params["wpi"].T) + params["bpi"]
    if mask is not None:
        logits = jnp.where(mask, logits, NEG_MIN)
    logits_norm = logits - jax.scipy.special.logsumexp(logits, axis=-1,
                                                       keepdims=True)
    probs = jnp.exp(logits_norm)
    plogp = probs * logits_norm
    if mask is not None:
        plogp = jnp.where(mask, plogp, 0.0)
    entropy = -jnp.sum(plogp, axis=-1)
    value = bdot(hc_n, params["wv"].T) + params["bv"]
    return ha_n, hc_n, logits_norm, probs, entropy, value


def _check_close(name, a, b, atol=5e-3, rtol=5e-3):
    if not bool(jnp.allclose(a, b, atol=atol, rtol=rtol)):
        raise AssertionError(
            f"{name} mismatch: max abs err "
            f"{float(jnp.max(jnp.abs(a - b))):.3e}")


# ----------------------------------------------------------------------------
# Demo / self-test.
# ----------------------------------------------------------------------------
if __name__ == "__main__":
    # Small shapes: obs NCHW (B=4, C=4, H=4, W=4) -> feature_dim = 64
    B, C, Hs, Ws = 4, 4, 4, 4
    feature_dim = C * Hs * Ws
    hidden_dim = 32
    action_dim = 8
    T = 6

    key = jax.random.PRNGKey(0)
    k_obs, k_obs2, k_seq, k_params, k_s1, k_s2 = jax.random.split(key, 6)

    obs = jax.random.normal(k_obs, (B, C, Hs, Ws), jnp.float32)
    obs2 = jax.random.normal(k_obs2, (B, C, Hs, Ws), jnp.float32)
    obs_seq = jax.random.normal(k_seq, (T, B, C, Hs, Ws), jnp.float32)

    params = make_params(feature_dim, action_dim, hidden_dim, k_params)
    packed, dims = pack_params(params, feature_dim, action_dim, hidden_dim)

    # Deterministic action mask with first action always legal.
    mask = (jnp.arange(action_dim)[None, :] + jnp.arange(B)[:, None]) % 3 != 1
    mask = mask.at[:, 0].set(True)

    # --- step 1 (zero initial state) ---
    (action, policy, log_prob, entropy, value,
     (h_a, h_c), state_packed) = gru_recurrent_actor_critic_forward(
        obs, packed, dims, states_gru=None, mask=mask, sample_key=k_s1)
    jax.block_until_ready((action, policy, log_prob, entropy, value, h_a, h_c))

    r_ha, r_hc, r_logp, r_probs, r_ent, r_val = reference_forward(
        obs, params, hidden_dim, action_dim, None, mask)

    # Shape checks (module semantics).
    assert action.shape == (B,)
    assert policy.shape == (B, action_dim)
    assert log_prob.shape == (B,)
    assert entropy.shape == (B,)
    assert value.shape == (B, 1)
    assert h_a.shape == (B, hidden_dim) and h_c.shape == (B, hidden_dim)

    # Numeric checks against the pure-JAX reference.
    assert bool(jnp.all(jnp.isfinite(policy)))
    assert bool(jnp.allclose(jnp.sum(policy, axis=-1), 1.0, atol=1e-3))
    assert bool(jnp.all(mask[jnp.arange(B), action]))  # sampled actions legal
    _check_close("hidden_actor", h_a, r_ha)
    _check_close("hidden_critic", h_c, r_hc)
    _check_close("policy", policy, r_probs)
    _check_close("entropy", entropy, r_ent)
    _check_close("value", value, r_val)
    _check_close("log_prob", log_prob,
                 jnp.take_along_axis(r_logp, action[:, None], axis=1)[:, 0])

    # --- step 2: feed the packed state slab straight back (no rebuild) ---
    (action2, policy2, log_prob2, entropy2, value2,
     (h_a2, h_c2), state_packed2) = gru_recurrent_actor_critic_forward(
        obs2, packed, dims, states_gru=state_packed, mask=mask, sample_key=k_s2)
    jax.block_until_ready((action2, policy2, value2, h_a2, h_c2))

    r2_ha, r2_hc, _, r2_probs, r2_ent, r2_val = reference_forward(
        obs2, params, hidden_dim, action_dim, (h_a, h_c), mask)
    _check_close("hidden_actor (step 2)", h_a2, r2_ha)
    _check_close("hidden_critic (step 2)", h_c2, r2_hc)
    _check_close("policy (step 2)", policy2, r2_probs)
    _check_close("entropy (step 2)", entropy2, r2_ent)
    _check_close("value (step 2)", value2, r2_val)

    # --- T-step rollout inside ONE kernel call (in-kernel time loop) ---
    mask_seq = jnp.broadcast_to(mask[None], (T, B, action_dim))
    slab_seq = gru_rollout(obs_seq, packed, dims, None, mask_seq)
    jax.block_until_ready(slab_seq)
    roll = unpack_slab(slab_seq, dims)

    st = None
    for t in range(T):
        ha_r, hc_r, _, probs_r, ent_r, val_r = reference_forward(
            obs_seq[t], params, hidden_dim, action_dim, st, mask)
        st = (ha_r, hc_r)
        _check_close(f"rollout hidden_actor t={t}", roll["hidden_actor"][t], ha_r)
        _check_close(f"rollout hidden_critic t={t}", roll["hidden_critic"][t], hc_r)
        _check_close(f"rollout policy t={t}", roll["policy"][t], probs_r)
        _check_close(f"rollout entropy t={t}", roll["entropy"][t], ent_r)
        _check_close(f"rollout value t={t}", roll["value"][t], val_r)

    print("KERNEL_OK")
</pallas_src>

<mosaic_0001>
module attributes {stable_mosaic.version = 11 : i64} {
  func.func @_policy_kernel(%arg0: i32, %arg1: i32, %arg2: memref<4x256xf32, #tpu.memory_space<vmem>>, %arg3: memref<1x4x64xf32, #tpu.memory_space<vmem>>, %arg4: memref<1x4x128xf32, #tpu.memory_space<vmem>>, %arg5: memref<64x768xbf16, #tpu.memory_space<vmem>>, %arg6: memref<128x384xbf16, #tpu.memory_space<vmem>>, %arg7: memref<128x384xbf16, #tpu.memory_space<vmem>>, %arg8: memref<256x256xbf16, #tpu.memory_space<vmem>>, %arg9: memref<8x768xf32, #tpu.memory_space<vmem>>, %arg10: memref<1x4x896xf32, #tpu.memory_space<vmem>>, %arg11: memref<4x256xf32, #tpu.memory_space<vmem>>) attributes {dimension_semantics = [#tpu.dimension_semantics<parallel>, #tpu.dimension_semantics<arbitrary>], iteration_bounds = array<i64: 1, 1>, scalar_prefetch = 0 : i64, scratch_operands = 1 : i64, tpu.core_type = #tpu.core_type<tc>, window_params = [{transform_indices = @transform_0, window_bounds = array<i64: 4, 256>}, {transform_indices = @transform_1, window_bounds = array<i64: 1, 4, 64>}, {transform_indices = @transform_2, window_bounds = array<i64: 1, 4, 128>}, {pipeline_mode = #tpu.pipeline_mode<synchronous>, transform_indices = @transform_3, window_bounds = array<i64: 64, 768>}, {pipeline_mode = #tpu.pipeline_mode<synchronous>, transform_indices = @transform_4, window_bounds = array<i64: 128, 384>}, {pipeline_mode = #tpu.pipeline_mode<synchronous>, transform_indices = @transform_5, window_bounds = array<i64: 128, 384>}, {pipeline_mode = #tpu.pipeline_mode<synchronous>, transform_indices = @transform_6, window_bounds = array<i64: 256, 256>}, {pipeline_mode = #tpu.pipeline_mode<synchronous>, transform_indices = @transform_7, window_bounds = array<i64: 8, 768>}, {transform_indices = @transform_8, window_bounds = array<i64: 1, 4, 896>}]} {
    %c0_i32 = arith.constant 0 : i32
    %0 = arith.cmpi eq, %arg1, %c0_i32 : i32
    %1 = arith.extui %0 : i1 to i32
    %c0_i32_0 = arith.constant 0 : i32
    %2 = arith.cmpi ne, %1, %c0_i32_0 : i32
    scf.if %2 {
      %c0_55 = arith.constant 0 : index
      %c0_56 = arith.constant 0 : index
      %143 = vector.load %arg2[%c0_55, %c0_56] : memref<4x256xf32, #tpu.memory_space<vmem>>, vector<4x256xf32>
      %c0_57 = arith.constant 0 : index
      %c0_58 = arith.constant 0 : index
      %144 = vector.load %arg11[%c0_57, %c0_58] : memref<4x256xf32, #tpu.memory_space<vmem>>, vector<4x256xf32>
      tpu.vector_store %arg11[%c0_57, %c0_58], %143 {strides = array<i32>} : memref<4x256xf32, #tpu.memory_space<vmem>>, vector<4x256xf32>,
    } else {
    }
    %c0 = arith.constant 0 : index
    %c0_1 = arith.constant 0 : index
    %c0_2 = arith.constant 0 : index
    %3 = vector.load %arg3[%c0, %c0_1, %c0_2] : memref<1x4x64xf32, #tpu.memory_space<vmem>>, vector<1x4x64xf32>
    %4 = vector.shape_cast %3 : vector<1x4x64xf32> to vector<4x64xf32>
    %c0_3 = arith.constant 0 : index
    %c0_4 = arith.constant 0 : index
    %5 = vector.load %arg11[%c0_3, %c0_4] : memref<4x256xf32, #tpu.memory_space<vmem>>, vector<4x256xf32>
    %6 = arith.truncf %4 : vector<4x64xf32> to vector<4x64xbf16>
    %c0_5 = arith.constant 0 : index
    %c0_6 = arith.constant 0 : index
    %7 = vector.load %arg5[%c0_5, %c0_6] : memref<64x768xbf16, #tpu.memory_space<vmem>>, vector<64x768xbf16>
    %cst = arith.constant dense<0.000000e+00> : vector<4x768xf32>
    %8 = tpu.matmul %6, %7, %cst {dimension_numbers = #tpu.dot_dimension_numbers<[1], [0], [0], [1], [0, 0, 1, 1], [], []>} : vector<4x64xbf16>, vector<64x768xbf16>, vector<4x768xf32> -> vector<4x768xf32>
    %c0_7 = arith.constant 0 : index
    %c0_8 = arith.constant 0 : index
    %9 = vector.load %arg9[%c0_7, %c0_8] : memref<8x768xf32, #tpu.memory_space<vmem>>, vector<1x768xf32>
    %10 = vector.broadcast %9 : vector<1x768xf32> to vector<4x768xf32>
    %11 = arith.addf %8, %10 : vector<4x768xf32>
    %12 = vector.extract_strided_slice %5 {offsets = [0, 0], sizes = [4, 128], strides = [1, 1]} : vector<4x256xf32> to vector<4x128xf32>
    %13 = arith.truncf %12 : vector<4x128xf32> to vector<4x128xbf16>
    %c0_9 = arith.constant 0 : index
    %c0_10 = arith.constant 0 : index
    %14 = vector.load %arg6[%c0_9, %c0_10] : memref<128x384xbf16, #tpu.memory_space<vmem>>, vector<128x384xbf16>
    %cst_11 = arith.constant dense<0.000000e+00> : vector<4x384xf32>
    %15 = tpu.matmul %13, %14, %cst_11 {dimension_numbers = #tpu.dot_dimension_numbers<[1], [0], [0], [1], [0, 0, 1, 1], [], []>} : vector<4x128xbf16>, vector<128x384xbf16>, vector<4x384xf32> -> vector<4x384xf32>
    %16 = vector.extract_strided_slice %5 {offsets = [0, 128], sizes = [4, 128], strides = [1, 1]} : vector<4x256xf32> to vector<4x128xf32>
    %17 = arith.truncf %16 : vector<4x128xf32> to vector<4x128xbf16>
    %c0_12 = arith.constant 0 : index
    %c0_13 = arith.constant 0 : index
    %18 = vector.load %arg7[%c0_12, %c0_13] : memref<128x384xbf16, #tpu.memory_space<vmem>>, vector<128x384xbf16>
    %cst_14 = arith.constant dense<0.000000e+00> : vector<4x384xf32>
    %19 = tpu.matmul %17, %18, %cst_14 {dimension_numbers = #tpu.dot_dimension_numbers<[1], [0], [0], [1], [0, 0, 1, 1], [], []>} : vector<4x128xbf16>, vector<128x384xbf16>, vector<4x384xf32> -> vector<4x384xf32>
    %20 = vector.extract_strided_slice %11 {offsets = [0, 0], sizes = [4, 384], strides = [1, 1]} : vector<4x768xf32> to vector<4x384xf32>
    %c1 = arith.constant 1 : index
    %c256 = arith.constant 256 : index
    %21 = vector.load %arg9[%c1, %c256] : memref<8x768xf32, #tpu.memory_space<vmem>>, vector<1x128xf32>
    %22 = vector.extract_strided_slice %5 {offsets = [0, 0], sizes = [4, 128], strides = [1, 1]} : vector<4x256xf32> to vector<4x128xf32>
    %23 = vector.extract_strided_slice %20 {offsets = [0, 0], sizes = [4, 128], strides = [1, 1]} : vector<4x384xf32> to vector<4x128xf32>
    %24 = vector.extract_strided_slice %15 {offsets = [0, 0], sizes = [4, 128], strides = [1, 1]} : vector<4x384xf32> to vector<4x128xf32>
    %25 = arith.addf %23, %24 : vector<4x128xf32>
    %26 = arith.negf %25 : vector<4x128xf32>
    %27 = math.exp %26 : vector<4x128xf32>
    %cst_15 = arith.constant 1.000000e+00 : f32
    %28 = vector.broadcast %cst_15 : f32 to vector<4x128xf32>
    %29 = arith.addf %28, %27 : vector<4x128xf32>
    %30 = arith.divf %28, %29 : vector<4x128xf32>
    %31 = vector.extract_strided_slice %20 {offsets = [0, 128], sizes = [4, 128], strides = [1, 1]} : vector<4x384xf32> to vector<4x128xf32>
    %32 = vector.extract_strided_slice %15 {offsets = [0, 128], sizes = [4, 128], strides = [1, 1]} : vector<4x384xf32> to vector<4x128xf32>
    %33 = arith.addf %31, %32 : vector<4x128xf32>
    %34 = arith.negf %33 : vector<4x128xf32>
    %35 = math.exp %34 : vector<4x128xf32>
    %cst_16 = arith.constant 1.000000e+00 : f32
    %36 = vector.broadcast %cst_16 : f32 to vector<4x128xf32>
    %37 = arith.addf %36, %35 : vector<4x128xf32>
    %38 = arith.divf %36, %37 : vector<4x128xf32>
    %39 = vector.extract_strided_slice %20 {offsets = [0, 256], sizes = [4, 128], strides = [1, 1]} : vector<4x384xf32> to vector<4x128xf32>
    %40 = vector.extract_strided_slice %15 {offsets = [0, 256], sizes = [4, 128], strides = [1, 1]} : vector<4x384xf32> to vector<4x128xf32>
    %41 = vector.broadcast %21 : vector<1x128xf32> to vector<4x128xf32>
    %42 = arith.addf %40, %41 : vector<4x128xf32>
    %43 = arith.mulf %30, %42 : vector<4x128xf32>
    %44 = arith.addf %39, %43 : vector<4x128xf32>
    %45 = math.tanh %44 : vector<4x128xf32>
    %cst_17 = arith.constant 1.000000e+00 : f32
    %46 = vector.broadcast %cst_17 : f32 to vector<4x128xf32>
    %47 = arith.subf %46, %38 : vector<4x128xf32>
    %48 = arith.mulf %47, %45 : vector<4x128xf32>
    %49 = arith.mulf %38, %22 : vector<4x128xf32>
    %50 = arith.addf %48, %49 : vector<4x128xf32>
    %51 = vector.extract_strided_slice %11 {offsets = [0, 384], sizes = [4, 384], strides = [1, 1]} : vector<4x768xf32> to vector<4x384xf32>
    %c1_18 = arith.constant 1 : index
    %c640 = arith.constant 640 : index
    %52 = vector.load %arg9[%c1_18, %c640] : memref<8x768xf32, #tpu.memory_space<vmem>>, vector<1x128xf32>
    %53 = vector.extract_strided_slice %5 {offsets = [0, 128], sizes = [4, 128], strides = [1, 1]} : vector<4x256xf32> to vector<4x128xf32>
    %54 = vector.extract_strided_slice %51 {offsets = [0, 0], sizes = [4, 128], strides = [1, 1]} : vector<4x384xf32> to vector<4x128xf32>
    %55 = vector.extract_strided_slice %19 {offsets = [0, 0], sizes = [4, 128], strides = [1, 1]} : vector<4x384xf32> to vector<4x128xf32>
    %56 = arith.addf %54, %55 : vector<4x128xf32>
    %57 = arith.negf %56 : vector<4x128xf32>
    %58 = math.exp %57 : vector<4x128xf32>
    %cst_19 = arith.constant 1.000000e+00 : f32
    %59 = vector.broadcast %cst_19 : f32 to vector<4x128xf32>
    %60 = arith.addf %59, %58 : vector<4x128xf32>
    %61 = arith.divf %59, %60 : vector<4x128xf32>
    %62 = vector.extract_strided_slice %51 {offsets = [0, 128], sizes = [4, 128], strides = [1, 1]} : vector<4x384xf32> to vector<4x128xf32>
    %63 = vector.extract_strided_slice %19 {offsets = [0, 128], sizes = [4, 128], strides = [1, 1]} : vector<4x384xf32> to vector<4x128xf32>
    %64 = arith.addf %62, %63 : vector<4x128xf32>
    %65 = arith.negf %64 : vector<4x128xf32>
    %66 = math.exp %65 : vector<4x128xf32>
    %cst_20 = arith.constant 1.000000e+00 : f32
    %67 = vector.broadcast %cst_20 : f32 to vector<4x128xf32>
    %68 = arith.addf %67, %66 : vector<4x128xf32>
    %69 = arith.divf %67, %68 : vector<4x128xf32>
    %70 = vector.extract_strided_slice %51 {offsets = [0, 256], sizes = [4, 128], strides = [1, 1]} : vector<4x384xf32> to vector<4x128xf32>
    %71 = vector.extract_strided_slice %19 {offsets = [0, 256], sizes = [4, 128], strides = [1, 1]} : vector<4x384xf32> to vector<4x128xf32>
    %72 = vector.broadcast %52 : vector<1x128xf32> to vector<4x128xf32>
    %73 = arith.addf %71, %72 : vector<4x128xf32>
    %74 = arith.mulf %61, %73 : vector<4x128xf32>
    %75 = arith.addf %70, %74 : vector<4x128xf32>
    %76 = math.tanh %75 : vector<4x128xf32>
    %cst_21 = arith.constant 1.000000e+00 : f32
    %77 = vector.broadcast %cst_21 : f32 to vector<4x128xf32>
    %78 = arith.subf %77, %69 : vector<4x128xf32>
    %79 = arith.mulf %78, %76 : vector<4x128xf32>
    %80 = arith.mulf %69, %53 : vector<4x128xf32>
    %81 = arith.addf %79, %80 : vector<4x128xf32>
    %82 = tpu.concatenate %50, %81 in 1 : vector<4x128xf32>, vector<4x128xf32> -> vector<4x256xf32>
    %c0_22 = arith.constant 0 : index
    %c0_23 = arith.constant 0 : index
    %83 = vector.load %arg11[%c0_22, %c0_23] : memref<4x256xf32, #tpu.memory_space<vmem>>, vector<4x256xf32>
    tpu.vector_store %arg11[%c0_22, %c0_23], %82 {strides = array<i32>} : memref<4x256xf32, #tpu.memory_space<vmem>>, vector<4x256xf32>,
    %84 = arith.truncf %82 : vector<4x256xf32> to vector<4x256xbf16>
    %c0_24 = arith.constant 0 : index
    %c0_25 = arith.constant 0 : index
    %85 = vector.load %arg8[%c0_24, %c0_25] : memref<256x256xbf16, #tpu.memory_space<vmem>>, vector<256x256xbf16>
    %cst_26 = arith.constant dense<0.000000e+00> : vector<4x256xf32>
    %86 = tpu.matmul %84, %85, %cst_26 {dimension_numbers = #tpu.dot_dimension_numbers<[1], [0], [0], [1], [0, 0, 1, 1], [], []>} : vector<4x256xbf16>, vector<256x256xbf16>, vector<4x256xf32> -> vector<4x256xf32>
    %c2 = arith.constant 2 : index
    %c0_27 = arith.constant 0 : index
    %87 = vector.load %arg9[%c2, %c0_27] : memref<8x768xf32, #tpu.memory_space<vmem>>, vector<1x256xf32>
    %88 = vector.broadcast %87 : vector<1x256xf32> to vector<4x256xf32>
    %89 = arith.addf %86, %88 : vector<4x256xf32>
    %c0_28 = arith.constant 0 : index
    %c0_29 = arith.constant 0 : index
    %c0_30 = arith.constant 0 : index
    %90 = vector.load %arg4[%c0_28, %c0_29, %c0_30] : memref<1x4x128xf32, #tpu.memory_space<vmem>>, vector<1x4x128xf32>
    %91 = vector.shape_cast %90 : vector<1x4x128xf32> to vector<4x128xf32>
    %cst_31 = arith.constant 5.000000e-01 : f32
    %92 = vector.broadcast %cst_31 : f32 to vector<4x128xf32>
    %93 = arith.cmpf ogt, %91, %92 : vector<4x128xf32>
    %94 = vector.extract_strided_slice %89 {offsets = [0, 0], sizes = [4, 128], strides = [1, 1]} : vector<4x256xf32> to vector<4x128xf32>
    %cst_32 = arith.constant -3.40282347E+38 : f32
    %95 = vector.broadcast %cst_32 : f32 to vector<4x128xf32>
    %96 = arith.select %93, %94, %95 : vector<4x128xi1>, vector<4x128xf32>
    %cst_33 = arith.constant dense<0xFF800000> : vector<4xf32>
    %97 = vector.multi_reduction <maximumf>, %96, %cst_33 [1] : vector<4x128xf32> to vector<4xf32>
    %98 = vector.shape_cast %97 : vector<4xf32> to vector<4x1xf32>
    %99 = vector.broadcast %98 : vector<4x1xf32> to vector<4x128xf32>
    %100 = arith.subf %96, %99 : vector<4x128xf32>
    %101 = math.exp %100 : vector<4x128xf32>
    %cst_34 = arith.constant dense<0.000000e+00> : vector<4xf32>
    %102 = vector.multi_reduction <add>, %101, %cst_34 [1] : vector<4x128xf32> to vector<4xf32>
    %103 = vector.shape_cast %102 : vector<4xf32> to vector<4x1xf32>
    %104 = math.log %103 : vector<4x1xf32>
    %105 = vector.broadcast %98 : vector<4x1xf32> to vector<4x128xf32>
    %106 = arith.subf %96, %105 : vector<4x128xf32>
    %107 = vector.broadcast %104 : vector<4x1xf32> to vector<4x128xf32>
    %108 = arith.subf %106, %107 : vector<4x128xf32>
    %109 = math.exp %108 : vector<4x128xf32>
    %110 = arith.mulf %109, %108 : vector<4x128xf32>
    %cst_35 = arith.constant 0.000000e+00 : f32
    %111 = vector.broadcast %cst_35 : f32 to vector<4x128xf32>
    %112 = arith.select %93, %110, %111 : vector<4x128xi1>, vector<4x128xf32>
    %cst_36 = arith.constant dense<0.000000e+00> : vector<4xf32>
    %113 = vector.multi_reduction <add>, %112, %cst_36 [1] : vector<4x128xf32> to vector<4xf32>
    %114 = vector.shape_cast %113 : vector<4xf32> to vector<4x1xf32>
    %cst_37 = arith.constant 0.000000e+00 : f32
    %115 = vector.broadcast %cst_37 : f32 to vector<4x1xf32>
    %116 = arith.subf %115, %114 : vector<4x1xf32>
    %c0_38 = arith.constant 0 : index
    %c0_39 = arith.constant 0 : index
    %c0_40 = arith.constant 0 : index
    %117 = vector.load %arg10[%c0_38, %c0_39, %c0_40] : memref<1x4x896xf32, #tpu.memory_space<vmem>>, vector<1x4x256xf32>
    %118 = vector.shape_cast %117 : vector<1x4x256xf32> to vector<4x256xf32>
    %119 = vector.shape_cast %82 : vector<4x256xf32> to vector<1x4x256xf32>
    tpu.vector_store %arg10[%c0_38, %c0_39, %c0_40], %119 {strides = array<i32>} : memref<1x4x896xf32, #tpu.memory_space<vmem>>, vector<1x4x256xf32>,
    %c0_41 = arith.constant 0 : index
    %c0_42 = arith.constant 0 : index
    %c256_43 = arith.constant 256 : index
    %120 = vector.load %arg10[%c0_41, %c0_42, %c256_43] : memref<1x4x896xf32, #tpu.memory_space<vmem>>, vector<1x4x128xf32>
    %121 = vector.shape_cast %120 : vector<1x4x128xf32> to vector<4x128xf32>
    %122 = vector.shape_cast %96 : vector<4x128xf32> to vector<1x4x128xf32>
    tpu.vector_store %arg10[%c0_41, %c0_42, %c256_43], %122 {strides = array<i32>} : memref<1x4x896xf32, #tpu.memory_space<vmem>>, vector<1x4x128xf32>,
    %c0_44 = arith.constant 0 : index
    %c0_45 = arith.constant 0 : index
    %c384 = arith.constant 384 : index
    %123 = vector.load %arg10[%c0_44, %c0_45, %c384] : memref<1x4x896xf32, #tpu.memory_space<vmem>>, vector<1x4x128xf32>
    %124 = vector.shape_cast %123 : vector<1x4x128xf32> to vector<4x128xf32>
    %125 = vector.shape_cast %109 : vector<4x128xf32> to vector<1x4x128xf32>
    tpu.vector_store %arg10[%c0_44, %c0_45, %c384], %125 {strides = array<i32>} : memref<1x4x896xf32, #tpu.memory_space<vmem>>, vector<1x4x128xf32>,
    %c0_46 = arith.constant 0 : index
    %c0_47 = arith.constant 0 : index
    %c512 = arith.constant 512 : index
    %126 = vector.load %arg10[%c0_46, %c0_47, %c512] : memref<1x4x896xf32, #tpu.memory_space<vmem>>, vector<1x4x128xf32>
    %127 = vector.shape_cast %126 : vector<1x4x128xf32> to vector<4x128xf32>
    %128 = vector.shape_cast %108 : vector<4x128xf32> to vector<1x4x128xf32>
    tpu.vector_store %arg10[%c0_46, %c0_47, %c512], %128 {strides = array<i32>} : memref<1x4x896xf32, #tpu.memory_space<vmem>>, vector<1x4x128xf32>,
    %129 = tpu.iota {dimensions = array<i32: 1>} : vector<4x128xi32>
    %c0_i32_48 = arith.constant 0 : i32
    %130 = vector.broadcast %c0_i32_48 : i32 to vector<4x128xi32>
    %131 = arith.cmpi eq, %129, %130 : vector<4x128xi32>
    %cst_49 = arith.constant 0.000000e+00 : f32
    %132 = vector.shape_cast %116 : vector<4x1xf32> to vector<4x1xf32>
    %133 = vector.broadcast %132 : vector<4x1xf32> to vector<4x128xf32>
    %134 = vector.broadcast %cst_49 : f32 to vector<4x128xf32>
    %135 = arith.select %131, %133, %134 : vector<4x128xi1>, vector<4x128xf32>
    %c0_50 = arith.constant 0 : index
    %c0_51 = arith.constant 0 : index
    %c640_52 = arith.constant 640 : index
    %136 = vector.load %arg10[%c0_50, %c0_51, %c640_52] : memref<1x4x896xf32, #tpu.memory_space<vmem>>, vector<1x4x128xf32>
    %137 = vector.shape_cast %136 : vector<1x4x128xf32> to vector<4x128xf32>
    %138 = vector.shape_cast %135 : vector<4x128xf32> to vector<1x4x128xf32>
    tpu.vector_store %arg10[%c0_50, %c0_51, %c640_52], %138 {strides = array<i32>} : memref<1x4x896xf32, #tpu.memory_space<vmem>>, vector<1x4x128xf32>,
    %139 = vector.extract_strided_slice %89 {offsets = [0, 128], sizes = [4, 128], strides = [1, 1]} : vector<4x256xf32> to vector<4x128xf32>
    %c0_53 = arith.constant 0 : index
    %c0_54 = arith.constant 0 : index
    %c768 = arith.constant 768 : index
    %140 = vector.load %arg10[%c0_53, %c0_54, %c768] : memref<1x4x896xf32, #tpu.memory_space<vmem>>, vector<1x4x128xf32>
    %141 = vector.shape_cast %140 : vector<1x4x128xf32> to vector<4x128xf32>
    %142 = vector.shape_cast %139 : vector<4x128xf32> to vector<1x4x128xf32>
    tpu.vector_store %arg10[%c0_53, %c0_54, %c768], %142 {strides = array<i32>} : memref<1x4x896xf32, #tpu.memory_space<vmem>>, vector<1x4x128xf32>,
    return
  }
  func.func @transform_0(%arg0: i32, %arg1: i32) -> (i32, i32) {
    %c0_i32 = arith.constant 0 : i32
    %c0_i32_0 = arith.constant 0 : i32
    return %arg0, %c0_i32 : i32, i32
  }
  func.func @transform_1(%arg0: i32, %arg1: i32) -> (i32, i32, i32) {
    %c0_i32 = arith.constant 0 : i32
    %c0_i32_0 = arith.constant 0 : i32
    return %arg1, %arg0, %c0_i32 : i32, i32, i32
  }
  func.func @transform_2(%arg0: i32, %arg1: i32) -> (i32, i32, i32) {
    %c0_i32 = arith.constant 0 : i32
    %c0_i32_0 = arith.constant 0 : i32
    return %arg1, %arg0, %c0_i32 : i32, i32, i32
  }
  func.func @transform_3(%arg0: i32, %arg1: i32) -> (i32, i32) {
    %c0_i32 = arith.constant 0 : i32
    %c0_i32_0 = arith.constant 0 : i32
    %c0_i32_1 = arith.constant 0 : i32
    return %c0_i32, %c0_i32_0 : i32, i32
  }
  func.func @transform_4(%arg0: i32, %arg1: i32) -> (i32, i32) {
    %c0_i32 = arith.constant 0 : i32
    %c0_i32_0 = arith.constant 0 : i32
    %c0_i32_1 = arith.constant 0 : i32
    return %c0_i32, %c0_i32_0 : i32, i32
  }
  func.func @transform_5(%arg0: i32, %arg1: i32) -> (i32, i32) {
    %c0_i32 = arith.constant 0 : i32
    %c0_i32_0 = arith.constant 0 : i32
    %c0_i32_1 = arith.constant 0 : i32
    return %c0_i32, %c0_i32_0 : i32, i32
  }
  func.func @transform_6(%arg0: i32, %arg1: i32) -> (i32, i32) {
    %c0_i32 = arith.constant 0 : i32
    %c0_i32_0 = arith.constant 0 : i32
    %c0_i32_1 = arith.constant 0 : i32
    return %c0_i32, %c0_i32_0 : i32, i32
  }
  func.func @transform_7(%arg0: i32, %arg1: i32) -> (i32, i32) {
    %c0_i32 = arith.constant 0 : i32
    %c0_i32_0 = arith.constant 0 : i32
    %c0_i32_1 = arith.constant 0 : i32
    return %c0_i32, %c0_i32_0 : i32, i32
  }
  func.func @transform_8(%arg0: i32, %arg1: i32) -> (i32, i32, i32) {
    %c0_i32 = arith.constant 0 : i32
    %c0_i32_0 = arith.constant 0 : i32
    return %arg1, %arg0, %c0_i32 : i32, i32, i32
  }
}

</mosaic_0001>

<llo_original>
// kernel: tpu_custom_call.1
$region0: #{tpu_custom_call.1}
  #allocation0 [shape = 'u32[]', space=smem, size = 0x4, offset = 0x4, fixed_abs, tag = 'smem constant byte address 0x4 - core index']
  #allocation1 [shape = 'u32[144,128]{1,0:T(1,128)}', space=vmem, size = 0x12000, scoped, tag = 'internal scratch']
  #allocation2 [shape = 'f32[4,256]{1,0:T(4,128)}', space=vmem, size = 0x1000, scoped, tag = 'scratch operand']
  %s0 = inlined_call_operand.hbm [shape: f32[4,256], index: 0, kind: input, shape index: {}]
  %s1 = inlined_call_operand.hbm [shape: f32[1,4,64], index: 1, kind: input, shape index: {}]
  %s2 = inlined_call_operand.vmem [shape: f32[1,4,128], index: 2, kind: input, shape index: {}]
  %s3 = inlined_call_operand.hbm [shape: bf16[64,768], index: 3, kind: input, shape index: {}]
  %s4 = inlined_call_operand.hbm [shape: bf16[128,384], index: 4, kind: input, shape index: {}]
  %s5 = inlined_call_operand.hbm [shape: bf16[128,384], index: 5, kind: input, shape index: {}]
  %s6 = inlined_call_operand.hbm [shape: bf16[256,256], index: 6, kind: input, shape index: {}]
  %s7 = inlined_call_operand.hbm [shape: f32[8,768], index: 7, kind: input, shape index: {}]
  %s8 = inlined_call_operand.hbm [shape: f32[1,4,896], index: 8, kind: output, shape index: {}]
  %s9 = sld [smem:[#allocation0]]
  $region74: #{tpu_custom_call.1} parent=0
    _
  %s11 = ssub.s32 1, %s9
  %s12 = scalar_select 0, %s11, %s9
  $region1: #{tpu_custom_call.1} parent=0
    #allocation3 [shape = 'u8[4096]{0}', space=vmem, size = 0x1000, scoped, tag = 'input window, operand 0, single buffered']
    #allocation4 [shape = 's32[1]{0}', space=sflag, size = 0x4, scoped, tag = 'scoped memory for tpu_custom_call.1']
    #allocation5 [shape = 's32[1]{0}', space=sflag, size = 0x4, scoped, tag = 'scoped memory for tpu_custom_call.1']
    #allocation6 [shape = 'u8[2048]{0}', space=vmem, size = 0x800, scoped, tag = 'input window, operand 1, single buffered']
    #allocation7 [shape = 's32[1]{0}', space=sflag, size = 0x4, scoped, tag = 'scoped memory for tpu_custom_call.1']
    #allocation8 [shape = 'u8[98304]{0}', space=vmem, size = 0x18000, scoped, tag = 'input window, operand 3, single buffered']
    #allocation9 [shape = 'u8[98304]{0}', space=vmem, size = 0x18000, scoped, tag = 'input window, operand 4, single buffered']
    #allocation10 [shape = 's32[1]{0}', space=sflag, size = 0x4, scoped, tag = 'scoped memory for tpu_custom_call.1']
    #allocation11 [shape = 'u8[98304]{0}', space=vmem, size = 0x18000, scoped, tag = 'input window, operand 5, single buffered']
    #allocation12 [shape = 'u8[131072]{0}', space=vmem, size = 0x20000, scoped, tag = 'input window, operand 6, single buffered']
    #allocation13 [shape = 's32[1]{0}', space=sflag, size = 0x4, scoped, tag = 'scoped memory for tpu_custom_call.1']
    #allocation14 [shape = 'u8[24576]{0}', space=vmem, size = 0x6000, scoped, tag = 'input window, operand 7, single buffered']
    #allocation15 [shape = 'u8[14336]{0}', space=vmem, size = 0x3800, scoped, tag = 'output window, operand 0, single buffered']
    %13 = vsyncpa [#allocation4], 0
    %14 = vsyncpa [#allocation7], 0
    %15 = vsyncpa [#allocation10], 0
    %16 = vsyncpa [#allocation13], 0
    %17 = vsyncpa [#allocation5], 0
    // Predicated region
    $region2: #{tpu_custom_call.1} parent=1 // pred_check
      _
    $region3: #{tpu_custom_call.1} parent=1 // pred_check_branch
      %19 = sbr.rel (0) target = $region5
    $region4: #{tpu_custom_call.1} parent=1 // pred_region
      %s21 = ssub.s32 128, 128
      %22 = vsyncadd [#allocation4], %s21
      %s24 = sshll.u32 [#allocation3], 4
      %s25 = int_to_ptr.vmem [resolvable:$true] %s24
      %27 = dma.hbm_to_vmem [thread:$0]  %s0, 128, %s25, [#allocation4]
    $region5: #{tpu_custom_call.1} parent=1 // pred_fallthru
      _
    // Predicated region
    $region6: #{tpu_custom_call.1} parent=1 // pred_check
      _
    $region7: #{tpu_custom_call.1} parent=1 // pred_check_branch
      %29 = sbr.rel (0) target = $region9
    $region8: #{tpu_custom_call.1} parent=1 // pred_region
      %s31 = ssub.s32 64, 64
      %32 = vsyncadd [#allocation7], %s31
      %s34 = sshll.u32 [#allocation6], 4
      %s35 = int_to_ptr.vmem [resolvable:$true] %s34
      %37 = dma.hbm_to_vmem [thread:$0]  %s1, 64, %s35, [#allocation7]
    $region9: #{tpu_custom_call.1} parent=1 // pred_fallthru
      _
    // Predicated region
    $region10: #{tpu_custom_call.1} parent=1 // pred_check
      _
    $region11: #{tpu_custom_call.1} parent=1 // pred_check_branch
      %39 = sbr.rel (0) target = $region13
    $region12: #{tpu_custom_call.1} parent=1 // pred_region
      _
    $region13: #{tpu_custom_call.1} parent=1 // pred_fallthru
      _
    // Predicated region
    $region14: #{tpu_custom_call.1} parent=1 // pred_check
      _
    $region15: #{tpu_custom_call.1} parent=1 // pred_check_branch
      %41 = sbr.rel (0) target = $region17
    $region16: #{tpu_custom_call.1} parent=1 // pred_region
      %s43 = ssub.s32 3072, 3072
      %44 = vsyncadd [#allocation7], %s43
      %s45 = sshll.u32 [#allocation8], 4
      %s46 = int_to_ptr.vmem [resolvable:$true] %s45
      %51 = dma.hbm_to_vmem [thread:$0]  %s3, 3072, %s46, [#allocation7], 384, 384, 24
    $region17: #{tpu_custom_call.1} parent=1 // pred_fallthru
      _
    // Predicated region
    $region18: #{tpu_custom_call.1} parent=1 // pred_check
      _
    $region19: #{tpu_custom_call.1} parent=1 // pred_check_branch
      %53 = sbr.rel (0) target = $region21
    $region20: #{tpu_custom_call.1} parent=1 // pred_region
      %s55 = ssub.s32 3072, 3072
      %56 = vsyncadd [#allocation10], %s55
      %s57 = sshll.u32 [#allocation9], 4
      %s58 = int_to_ptr.vmem [resolvable:$true] %s57
      %63 = dma.hbm_to_vmem [thread:$0]  %s4, 3072, %s58, [#allocation10], 192, 192, 12
    $region21: #{tpu_custom_call.1} parent=1 // pred_fallthru
      _
    // Predicated region
    $region22: #{tpu_custom_call.1} parent=1 // pred_check
      _
    $region23: #{tpu_custom_call.1} parent=1 // pred_check_branch
      %65 = sbr.rel (0) target = $region25
    $region24: #{tpu_custom_call.1} parent=1 // pred_region
      %s67 = ssub.s32 3072, 3072
      %68 = vsyncadd [#allocation10], %s67
      %s69 = sshll.u32 [#allocation11], 4
      %s70 = int_to_ptr.vmem [resolvable:$true] %s69
      %75 = dma.hbm_to_vmem [thread:$0]  %s5, 3072, %s70, [#allocation10], 192, 192, 12
    $region25: #{tpu_custom_call.1} parent=1 // pred_fallthru
      _
    // Predicated region
    $region26: #{tpu_custom_call.1} parent=1 // pred_check
      _
    $region27: #{tpu_custom_call.1} parent=1 // pred_check_branch
      %77 = sbr.rel (0) target = $region29
    $region28: #{tpu_custom_call.1} parent=1 // pred_region
      %s79 = ssub.s32 4096, 4096
      %80 = vsyncadd [#allocation13], %s79
      %s81 = sshll.u32 [#allocation12], 4
      %s82 = int_to_ptr.vmem [resolvable:$true] %s81
      %87 = dma.hbm_to_vmem [thread:$0]  %s6, 4096, %s82, [#allocation13], 128, 128, 8
    $region29: #{tpu_custom_call.1} parent=1 // pred_fallthru
      _
    // Predicated region
    $region30: #{tpu_custom_call.1} parent=1 // pred_check
      _
    $region31: #{tpu_custom_call.1} parent=1 // pred_check_branch
      %89 = sbr.rel (0) target = $region33
    $region32: #{tpu_custom_call.1} parent=1 // pred_region
      %s91 = ssub.s32 768, 768
      %92 = vsyncadd [#allocation13], %s91
      %s94 = sshll.u32 [#allocation14], 4
      %s95 = int_to_ptr.vmem [resolvable:$true] %s94
      %97 = dma.hbm_to_vmem [thread:$0]  %s7, 768, %s95, [#allocation13]
    $region33: #{tpu_custom_call.1} parent=1 // pred_fallthru
      _
    // Predicated region
    $region34: #{tpu_custom_call.1} parent=1 // pred_check
      _
    $region35: #{tpu_custom_call.1} parent=1 // pred_check_branch
      %99 = sbr.rel (0) target = $region37
    $region36: #{tpu_custom_call.1} parent=1 // pred_region
      %100 = dma.done [#allocation4], 128
    $region37: #{tpu_custom_call.1} parent=1 // pred_fallthru
      _
    // Predicated region
    $region38: #{tpu_custom_call.1} parent=1 // pred_check
      _
    $region39: #{tpu_custom_call.1} parent=1 // pred_check_branch
      %102 = sbr.rel (0) target = $region41
    $region40: #{tpu_custom_call.1} parent=1 // pred_region
      %103 = dma.done [#allocation7], 64
    $region41: #{tpu_custom_call.1} parent=1 // pred_fallthru
      _
    // Predicated region
    $region42: #{tpu_custom_call.1} parent=1 // pred_check
      _
    $region43: #{tpu_custom_call.1} parent=1 // pred_check_branch
      %105 = sbr.rel (0) target = $region45
    $region44: #{tpu_custom_call.1} parent=1 // pred_region
      %106 = dma.done [#allocation7], 3072
    $region45: #{tpu_custom_call.1} parent=1 // pred_fallthru
      _
    // Predicated region
    $region46: #{tpu_custom_call.1} parent=1 // pred_check
      _
    $region47: #{tpu_custom_call.1} parent=1 // pred_check_branch
      %108 = sbr.rel (0) target = $region49
    $region48: #{tpu_custom_call.1} parent=1 // pred_region
      %109 = dma.done [#allocation10], 3072
    $region49: #{tpu_custom_call.1} parent=1 // pred_fallthru
      _
    // Predicated region
    $region50: #{tpu_custom_call.1} parent=1 // pred_check
      _
    $region51: #{tpu_custom_call.1} parent=1 // pred_check_branch
      %111 = sbr.rel (0) target = $region53
    $region52: #{tpu_custom_call.1} parent=1 // pred_region
      %112 = dma.done [#allocation10], 3072
    $region53: #{tpu_custom_call.1} parent=1 // pred_fallthru
      _
    // Predicated region
    $region54: #{tpu_custom_call.1} parent=1 // pred_check
      _
    $region55: #{tpu_custom_call.1} parent=1 // pred_check_branch
      %114 = sbr.rel (0) target = $region57
    $region56: #{tpu_custom_call.1} parent=1 // pred_region
      %115 = dma.done [#allocation13], 4096
    $region57: #{tpu_custom_call.1} parent=1 // pred_fallthru
      _
    // Predicated region
    $region58: #{tpu_custom_call.1} parent=1 // pred_check
      _
    $region59: #{tpu_custom_call.1} parent=1 // pred_check_branch
      %117 = sbr.rel (0) target = $region61
    $region60: #{tpu_custom_call.1} parent=1 // pred_region
      %118 = dma.done [#allocation13], 768
    $region61: #{tpu_custom_call.1} parent=1 // pred_fallthru
      _
    %p120 = scmp.eq.s32.totalorder 0, 0
    // Predicated region
    $region62: #{tpu_custom_call.1} parent=1 // pred_check
      %p121 = pneg %p120
    $region63: #{tpu_custom_call.1} parent=1 // pred_check_branch
      %123 = sbr.rel (%p121) target = $region65
    $region64: #{tpu_custom_call.1} parent=1 // pred_region
      %v124 = vld [vmem:[#allocation3] sm:$0xff]
      %125 = vst [vmem:[#allocation2] sm:$0xff] %v124
    $region65: #{tpu_custom_call.1} parent=1 // pred_fallthru
      _
    %v126 = vld [vmem:[#allocation6] sm:$0xf]
    %v127 = vld [vmem:[#allocation2] sm:$0xff]
    %v128 = vpack.c.bf16 %v126, %v126
    %v129 = vld [vmem:[#allocation8] sm:$0xff]
    %v130 = vld [vmem:[#allocation8 + $0x8] sm:$0xff]
    %v131 = vld [vmem:[#allocation8 + $0x10] sm:$0xff]
    %v132 = vld [vmem:[#allocation8 + $0x18] sm:$0xff]
    %v133 = vld [vmem:[#allocation8 + $0x20] sm:$0xff]
    %v134 = vld [vmem:[#allocation8 + $0x28] sm:$0xff]
    %v135 = vld [vmem:[#allocation8 + $0x30] sm:$0xff]
    %v136 = vld [vmem:[#allocation8 + $0x38] sm:$0xff]
    %v137 = vld [vmem:[#allocation8 + $0x40] sm:$0xff]
    %v138 = vld [vmem:[#allocation8 + $0x48] sm:$0xff]
    %v139 = vld [vmem:[#allocation8 + $0x50] sm:$0xff]
    %v140 = vld [vmem:[#allocation8 + $0x58] sm:$0xff]
    %v141 = vld [vmem:[#allocation8 + $0x60] sm:$0xff]
    %v142 = vld [vmem:[#allocation8 + $0x68] sm:$0xff]
    %v143 = vld [vmem:[#allocation8 + $0x70] sm:$0xff]
    %v144 = vld [vmem:[#allocation8 + $0x78] sm:$0xff]
    %v145 = vld [vmem:[#allocation8 + $0x80] sm:$0xff]
    %v146 = vld [vmem:[#allocation8 + $0x88] sm:$0xff]
    %v147 = vld [vmem:[#allocation8 + $0x90] sm:$0xff]
    %v148 = vld [vmem:[#allocation8 + $0x98] sm:$0xff]
    %v149 = vld [vmem:[#allocation8 + $0xa0] sm:$0xff]
    %v150 = vld [vmem:[#allocation8 + $0xa8] sm:$0xff]
    %v151 = vld [vmem:[#allocation8 + $0xb0] sm:$0xff]
    %v152 = vld [vmem:[#allocation8 + $0xb8] sm:$0xff]
    %v153 = vld [vmem:[#allocation14] ss:$8 sm:$0xf]
    %v154 = vld [vmem:[#allocation14] ss:$8 sm:$0x30]
    %v155 = vor.u32 %v153, %v154
    %v157 = vlaneseq
    %v158 = vshrl.u32 %v157, 7
    %v159 = vsub.s32 0, %v158
    %v160 = vrot.slane %v155, %v159
    %v161 = vlaneseq
    %v162 = vshrl.u32 %v161, 7
    %v163 = vsub.s32 1, %v162
    %v164 = vrot.slane %v155, %v163
    %v165 = vlaneseq
    %v166 = vshrl.u32 %v165, 7
    %v167 = vsub.s32 2, %v166
    %v168 = vrot.slane %v155, %v167
    %v169 = vlaneseq
    %v170 = vshrl.u32 %v169, 7
    %v171 = vsub.s32 3, %v170
    %v172 = vrot.slane %v155, %v171
    %v173 = vlaneseq
    %v174 = vshrl.u32 %v173, 7
    %v175 = vsub.s32 4, %v174
    %v176 = vrot.slane %v155, %v175
    %v177 = vlaneseq
    %v178 = vshrl.u32 %v177, 7
    %v179 = vsub.s32 5, %v178
    %v180 = vrot.slane %v155, %v179
    %v211 = vunpack.c.l.b16 %v129
    %v212 = vunpack.c.h.b16 %v129
    %v213 = vunpack.c.l.b16 %v130
    %v214 = vunpack.c.h.b16 %v130
    %v215 = vunpack.c.l.b16 %v131
    %v216 = vunpack.c.h.b16 %v131
    %v217 = vunpack.c.l.b16 %v132
    %v218 = vunpack.c.h.b16 %v132
    %v219 = vunpack.c.l.b16 %v133
    %v220 = vunpack.c.h.b16 %v133
    %v221 = vunpack.c.l.b16 %v134
    %v222 = vunpack.c.h.b16 %v134
    %v223 = vunpack.c.l.b16 %v135
    %v224 = vunpack.c.h.b16 %v135
    %v225 = vunpack.c.l.b16 %v136
    %v226 = vunpack.c.h.b16 %v136
    %v227 = vunpack.c.l.b16 %v137
    %v228 = vunpack.c.h.b16 %v137
    %v229 = vunpack.c.l.b16 %v138
    %v230 = vunpack.c.h.b16 %v138
    %v231 = vunpack.c.l.b16 %v139
    %v232 = vunpack.c.h.b16 %v139
    %v233 = vunpack.c.l.b16 %v140
    %v234 = vunpack.c.h.b16 %v140
    %v235 = vunpack.c.l.b16 %v141
    %v236 = vunpack.c.h.b16 %v141
    %v237 = vunpack.c.l.b16 %v142
    %v238 = vunpack.c.h.b16 %v142
    %v239 = vunpack.c.l.b16 %v143
    %v240 = vunpack.c.h.b16 %v143
    %v241 = vunpack.c.l.b16 %v144
    %v242 = vunpack.c.h.b16 %v144
    %v243 = vunpack.c.l.b16 %v145
    %v244 = vunpack.c.h.b16 %v145
    %v245 = vunpack.c.l.b16 %v146
    %v246 = vunpack.c.h.b16 %v146
    %v247 = vunpack.c.l.b16 %v147
    %v248 = vunpack.c.h.b16 %v147
    %v249 = vunpack.c.l.b16 %v148
    %v250 = vunpack.c.h.b16 %v148
    %v251 = vunpack.c.l.b16 %v149
    %v252 = vunpack.c.h.b16 %v149
    %v253 = vunpack.c.l.b16 %v150
    %v254 = vunpack.c.h.b16 %v150
    %v255 = vunpack.c.l.b16 %v151
    %v256 = vunpack.c.h.b16 %v151
    %v257 = vunpack.c.l.b16 %v152
    %v258 = vunpack.c.h.b16 %v152
    %v259 = vpack.c.b16 %v217, %v211
    %v260 = vpack.c.b16 %v218, %v212
    %v261 = vpack.c.b16 %v219, %v213
    %v262 = vpack.c.b16 %v220, %v214
    %v263 = vpack.c.b16 %v221, %v215
    %v264 = vpack.c.b16 %v222, %v216
    %v265 = vpack.c.b16 %v229, %v223
    %v266 = vpack.c.b16 %v230, %v224
    %v267 = vpack.c.b16 %v231, %v225
    %v268 = vpack.c.b16 %v232, %v226
    %v269 = vpack.c.b16 %v233, %v227
    %v270 = vpack.c.b16 %v234, %v228
    %v271 = vpack.c.b16 %v241, %v235
    %v272 = vpack.c.b16 %v242, %v236
    %v273 = vpack.c.b16 %v243, %v237
    %v274 = vpack.c.b16 %v244, %v238
    %v275 = vpack.c.b16 %v245, %v239
    %v276 = vpack.c.b16 %v246, %v240
    %v277 = vpack.c.b16 %v253, %v247
    %v278 = vpack.c.b16 %v254, %v248
    %v279 = vpack.c.b16 %v255, %v249
    %v280 = vpack.c.b16 %v256, %v250
    %v281 = vpack.c.b16 %v257, %v251
    %v282 = vpack.c.b16 %v258, %v252
    %vm307 = vcmask 523264
    %v309 = vsel %vm307, %v128, 0
    %311 = vmatprep.subr.bf16.mxu0 %v260
    %312 = vmatpush1.bf16.msra.mxu0 %v259
    %313 = vmatprep.subr.bf16.mxu0 %v266
    %314 = vmatpush1.bf16.msra.mxu0 %v265
    %315 = vmatprep.subr.bf16.mxu0 %v272
    %316 = vmatpush1.bf16.msra.mxu0 %v271
    %317 = vmatprep.subr.bf16.mxu0 %v278
    %318 = vmatpush1.bf16.msra.mxu0 %v277
    %319 = vmatprep.subr.bf16.mxu0 0
    %320 = vmatpush1.bf16.msra.mxu0 0
    %321 = vmatprep.subr.bf16.mxu0 0
    %322 = vmatpush1.bf16.msra.mxu0 0
    %323 = vmatprep.subr.bf16.mxu0 0
    %324 = vmatpush1.bf16.msra.mxu0 0
    %325 = vmatprep.subr.bf16.mxu0 0
    %326 = vmatpush1.bf16.msra.mxu0 0
    %327 = vmatprep.subr.bf16.mxu0 0
    %328 = vmatpush1.bf16.msra.mxu0 0
    %329 = vmatprep.subr.bf16.mxu0 0
    %330 = vmatpush1.bf16.msra.mxu0 0
    %331 = vmatprep.subr.bf16.mxu0 0
    %332 = vmatpush1.bf16.msra.mxu0 0
    %333 = vmatprep.subr.bf16.mxu0 0
    %334 = vmatpush1.bf16.msra.mxu0 0
    %335 = vmatprep.subr.bf16.mxu0 0
    %336 = vmatpush1.bf16.msra.mxu0 0
    %337 = vmatprep.subr.bf16.mxu0 0
    %338 = vmatpush1.bf16.msra.mxu0 0
    %339 = vmatprep.subr.bf16.mxu0 0
    %340 = vmatpush1.bf16.msra.mxu0 0
    %341 = vmatprep.subr.bf16.mxu0 0
    %342 = vmatpush1.bf16.msra.mxu0 0
    %343 = vmatprep.mubr.bf16.mxu0 0
    %344 = vmatmul.mubr.bf16.gmra.mrb[0].mxu0 %v309
    %v345 = vpop.f32.mrb[0].mxu0
    %v346 = vadd.f32 %v160, %v345
    %v347 = vpop.f32.mrb[0].mxu0
    %v348 = vadd.f32 %v164, %v347
    %v349 = vpop.f32.mrb[0].mxu0
    %v350 = vpop.f32.mrb[0].mxu0
    %351 = vdwg.mxu0
    %352 = vmatprep.subr.bf16.mxu0 %v262
    %353 = vmatpush1.bf16.msra.mxu0 %v261
    %354 = vmatprep.subr.bf16.mxu0 %v268
    %355 = vmatpush1.bf16.msra.mxu0 %v267
    %356 = vmatprep.subr.bf16.mxu0 %v274
    %357 = vmatpush1.bf16.msra.mxu0 %v273
    %358 = vmatprep.subr.bf16.mxu0 %v280
    %359 = vmatpush1.bf16.msra.mxu0 %v279
    %360 = vmatprep.subr.bf16.mxu0 0
    %361 = vmatpush1.bf16.msra.mxu0 0
    %362 = vmatprep.subr.bf16.mxu0 0
    %363 = vmatpush1.bf16.msra.mxu0 0
    %364 = vmatprep.subr.bf16.mxu0 0
    %365 = vmatpush1.bf16.msra.mxu0 0
    %366 = vmatprep.subr.bf16.mxu0 0
    %367 = vmatpush1.bf16.msra.mxu0 0
    %368 = vmatprep.subr.bf16.mxu0 0
    %369 = vmatpush1.bf16.msra.mxu0 0
    %370 = vmatprep.subr.bf16.mxu0 0
    %371 = vmatpush1.bf16.msra.mxu0 0
    %372 = vmatprep.subr.bf16.mxu0 0
    %373 = vmatpush1.bf16.msra.mxu0 0
    %374 = vmatprep.subr.bf16.mxu0 0
    %375 = vmatpush1.bf16.msra.mxu0 0
    %376 = vmatprep.subr.bf16.mxu0 0
    %377 = vmatpush1.bf16.msra.mxu0 0
    %378 = vmatprep.subr.bf16.mxu0 0
    %379 = vmatpush1.bf16.msra.mxu0 0
    %380 = vmatprep.subr.bf16.mxu0 0
    %381 = vmatpush1.bf16.msra.mxu0 0
    %382 = vmatprep.subr.bf16.mxu0 0
    %383 = vmatpush1.bf16.msra.mxu0 0
    %384 = vmatprep.mubr.bf16.mxu0 0
    %385 = vmatmul.mubr.bf16.gmra.mrb[0].mxu0 %v309
    %v386 = vpop.f32.mrb[0].mxu0
    %v387 = vadd.f32 %v168, %v386
    %v388 = vpop.f32.mrb[0].mxu0
    %v389 = vadd.f32 %v172, %v388
    %v390 = vpop.f32.mrb[0].mxu0
    %v391 = vpop.f32.mrb[0].mxu0
    %392 = vdwg.mxu0
    %393 = vmatprep.subr.bf16.mxu0 %v264
    %394 = vmatpush1.bf16.msra.mxu0 %v263
    %395 = vmatprep.subr.bf16.mxu0 %v270
    %396 = vmatpush1.bf16.msra.mxu0 %v269
    %397 = vmatprep.subr.bf16.mxu0 %v276
    %398 = vmatpush1.bf16.msra.mxu0 %v275
    %399 = vmatprep.subr.bf16.mxu0 %v282
    %400 = vmatpush1.bf16.msra.mxu0 %v281
    %401 = vmatprep.subr.bf16.mxu0 0
    %402 = vmatpush1.bf16.msra.mxu0 0
    %403 = vmatprep.subr.bf16.mxu0 0
    %404 = vmatpush1.bf16.msra.mxu0 0
    %405 = vmatprep.subr.bf16.mxu0 0
    %406 = vmatpush1.bf16.msra.mxu0 0
    %407 = vmatprep.subr.bf16.mxu0 0
    %408 = vmatpush1.bf16.msra.mxu0 0
    %409 = vmatprep.subr.bf16.mxu0 0
    %410 = vmatpush1.bf16.msra.mxu0 0
    %411 = vmatprep.subr.bf16.mxu0 0
    %412 = vmatpush1.bf16.msra.mxu0 0
    %413 = vmatprep.subr.bf16.mxu0 0
    %414 = vmatpush1.bf16.msra.mxu0 0
    %415 = vmatprep.subr.bf16.mxu0 0
    %416 = vmatpush1.bf16.msra.mxu0 0
    %417 = vmatprep.subr.bf16.mxu0 0
    %418 = vmatpush1.bf16.msra.mxu0 0
    %419 = vmatprep.subr.bf16.mxu0 0
    %420 = vmatpush1.bf16.msra.mxu0 0
    %421 = vmatprep.subr.bf16.mxu0 0
    %422 = vmatpush1.bf16.msra.mxu0 0
    %423 = vmatprep.subr.bf16.mxu0 0
    %424 = vmatpush1.bf16.msra.mxu0 0
    %425 = vmatprep.mubr.bf16.mxu0 0
    %426 = vmatmul.mubr.bf16.gmra.mrb[0].mxu0 %v309
    %v427 = vpop.f32.mrb[0].mxu0
    %v428 = vadd.f32 %v176, %v427
    %v429 = vpop.f32.mrb[0].mxu0
    %v430 = vadd.f32 %v180, %v429
    %v431 = vpop.f32.mrb[0].mxu0
    %v432 = vpop.f32.mrb[0].mxu0
    %433 = vdwg.mxu0
    %v434 = vpack.c.bf16 %v127, %v127
    %v435 = vld [vmem:[#allocation9] sm:$0xff]
    %v436 = vld [vmem:[#allocation9 + $0x8] sm:$0xf]
    %v437 = vld [vmem:[#allocation9 + $0xc] sm:$0xff]
    %v438 = vld [vmem:[#allocation9 + $0x14] sm:$0xf]
    %v439 = vld [vmem:[#allocation9 + $0x18] sm:$0xff]
    %v440 = vld [vmem:[#allocation9 + $0x20] sm:$0xf]
    %v441 = vld [vmem:[#allocation9 + $0x24] sm:$0xff]
    %v442 = vld [vmem:[#allocation9 + $0x2c] sm:$0xf]
    %v443 = vld [vmem:[#allocation9 + $0x30] sm:$0xff]
    %v444 = vld [vmem:[#allocation9 + $0x38] sm:$0xf]
    %v445 = vld [vmem:[#allocation9 + $0x3c] sm:$0xff]
    %v446 = vld [vmem:[#allocation9 + $0x44] sm:$0xf]
    %v447 = vld [vmem:[#allocation9 + $0x48] sm:$0xff]
    %v448 = vld [vmem:[#allocation9 + $0x50] sm:$0xf]
    %v449 = vld [vmem:[#allocation9 + $0x54] sm:$0xff]
    %v450 = vld [vmem:[#allocation9 + $0x5c] sm:$0xf]
    %v451 = vld [vmem:[#allocation9 + $0x60] sm:$0xff]
    %v452 = vld [vmem:[#allocation9 + $0x68] sm:$0xf]
    %v453 = vld [vmem:[#allocation9 + $0x6c] sm:$0xff]
    %v454 = vld [vmem:[#allocation9 + $0x74] sm:$0xf]
    %v455 = vld [vmem:[#allocation9 + $0x78] sm:$0xff]
    %v456 = vld [vmem:[#allocation9 + $0x80] sm:$0xf]
    %v457 = vld [vmem:[#allocation9 + $0x84] sm:$0xff]
    %v458 = vld [vmem:[#allocation9 + $0x8c] sm:$0xf]
    %v459 = vld [vmem:[#allocation9 + $0x90] sm:$0xff]
    %v460 = vld [vmem:[#allocation9 + $0x98] sm:$0xf]
    %v461 = vld [vmem:[#allocation9 + $0x9c] sm:$0xff]
    %v462 = vld [vmem:[#allocation9 + $0xa4] sm:$0xf]
    %v463 = vld [vmem:[#allocation9 + $0xa8] sm:$0xff]
    %v464 = vld [vmem:[#allocation9 + $0xb0] sm:$0xf]
    %v465 = vld [vmem:[#allocation9 + $0xb4] sm:$0xff]
    %v466 = vld [vmem:[#allocation9 + $0xbc] sm:$0xf]
    %v499 = vunpack.c.l.b16 %v435
    %v500 = vunpack.c.h.b16 %v435
    %v501 = vunpack.c.l.b16 %v436
    %v502 = vunpack.c.l.b16 %v437
    %v503 = vunpack.c.h.b16 %v437
    %v504 = vunpack.c.l.b16 %v438
    %v505 = vunpack.c.l.b16 %v439
    %v506 = vunpack.c.h.b16 %v439
    %v507 = vunpack.c.l.b16 %v440
    %v508 = vunpack.c.l.b16 %v441
    %v509 = vunpack.c.h.b16 %v441
    %v510 = vunpack.c.l.b16 %v442
    %v511 = vunpack.c.l.b16 %v443
    %v512 = vunpack.c.h.b16 %v443
    %v513 = vunpack.c.l.b16 %v444
    %v514 = vunpack.c.l.b16 %v445
    %v515 = vunpack.c.h.b16 %v445
    %v516 = vunpack.c.l.b16 %v446
    %v517 = vunpack.c.l.b16 %v447
    %v518 = vunpack.c.h.b16 %v447
    %v519 = vunpack.c.l.b16 %v448
    %v520 = vunpack.c.l.b16 %v449
    %v521 = vunpack.c.h.b16 %v449
    %v522 = vunpack.c.l.b16 %v450
    %v523 = vunpack.c.l.b16 %v451
    %v524 = vunpack.c.h.b16 %v451
    %v525 = vunpack.c.l.b16 %v452
    %v526 = vunpack.c.l.b16 %v453
    %v527 = vunpack.c.h.b16 %v453
    %v528 = vunpack.c.l.b16 %v454
    %v529 = vunpack.c.l.b16 %v455
    %v530 = vunpack.c.h.b16 %v455
    %v531 = vunpack.c.l.b16 %v456
    %v532 = vunpack.c.l.b16 %v457
    %v533 = vunpack.c.h.b16 %v457
    %v534 = vunpack.c.l.b16 %v458
    %v535 = vunpack.c.l.b16 %v459
    %v536 = vunpack.c.h.b16 %v459
    %v537 = vunpack.c.l.b16 %v460
    %v538 = vunpack.c.l.b16 %v461
    %v539 = vunpack.c.h.b16 %v461
    %v540 = vunpack.c.l.b16 %v462
    %v541 = vunpack.c.l.b16 %v463
    %v542 = vunpack.c.h.b16 %v463
    %v543 = vunpack.c.l.b16 %v464
    %v544 = vunpack.c.l.b16 %v465
    %v545 = vunpack.c.h.b16 %v465
    %v546 = vunpack.c.l.b16 %v466
    %v547 = vpack.c.b16 %v502, %v499
    %v548 = vpack.c.b16 %v503, %v500
    %v549 = vpack.c.b16 %v504, %v501
    %v550 = vpack.c.b16 %v508, %v505
    %v551 = vpack.c.b16 %v509, %v506
    %v552 = vpack.c.b16 %v510, %v507
    %v553 = vpack.c.b16 %v514, %v511
    %v554 = vpack.c.b16 %v515, %v512
    %v555 = vpack.c.b16 %v516, %v513
    %v556 = vpack.c.b16 %v520, %v517
    %v557 = vpack.c.b16 %v521, %v518
    %v558 = vpack.c.b16 %v522, %v519
    %v559 = vpack.c.b16 %v526, %v523
    %v560 = vpack.c.b16 %v527, %v524
    %v561 = vpack.c.b16 %v528, %v525
    %v562 = vpack.c.b16 %v532, %v529
    %v563 = vpack.c.b16 %v533, %v530
    %v564 = vpack.c.b16 %v534, %v531
    %v565 = vpack.c.b16 %v538, %v535
    %v566 = vpack.c.b16 %v539, %v536
    %v567 = vpack.c.b16 %v540, %v537
    %v568 = vpack.c.b16 %v544, %v541
    %v569 = vpack.c.b16 %v545, %v542
    %v570 = vpack.c.b16 %v546, %v543
    %595 = vmatprep.subr.bf16.mxu0 %v548
    %596 = vmatpush1.bf16.msra.mxu0 %v547
    %597 = vmatprep.subr.bf16.mxu0 %v551
    %598 = vmatpush1.bf16.msra.mxu0 %v550
    %599 = vmatprep.subr.bf16.mxu0 %v554
    %600 = vmatpush1.bf16.msra.mxu0 %v553
    %601 = vmatprep.subr.bf16.mxu0 %v557
    %602 = vmatpush1.bf16.msra.mxu0 %v556
    %603 = vmatprep.subr.bf16.mxu0 %v560
    %604 = vmatpush1.bf16.msra.mxu0 %v559
    %605 = vmatprep.subr.bf16.mxu0 %v563
    %606 = vmatpush1.bf16.msra.mxu0 %v562
    %607 = vmatprep.subr.bf16.mxu0 %v566
    %608 = vmatpush1.bf16.msra.mxu0 %v565
    %609 = vmatprep.subr.bf16.mxu0 %v569
    %610 = vmatpush1.bf16.msra.mxu0 %v568
    %611 = vmatprep.subr.bf16.mxu0 0
    %612 = vmatpush1.bf16.msra.mxu0 0
    %613 = vmatprep.subr.bf16.mxu0 0
    %614 = vmatpush1.bf16.msra.mxu0 0
    %615 = vmatprep.subr.bf16.mxu0 0
    %616 = vmatpush1.bf16.msra.mxu0 0
    %617 = vmatprep.subr.bf16.mxu0 0
    %618 = vmatpush1.bf16.msra.mxu0 0
    %619 = vmatprep.subr.bf16.mxu0 0
    %620 = vmatpush1.bf16.msra.mxu0 0
    %621 = vmatprep.subr.bf16.mxu0 0
    %622 = vmatpush1.bf16.msra.mxu0 0
    %623 = vmatprep.subr.bf16.mxu0 0
    %624 = vmatpush1.bf16.msra.mxu0 0
    %625 = vmatprep.subr.bf16.mxu0 0
    %626 = vmatpush1.bf16.msra.mxu0 0
    %627 = vmatprep.mubr.bf16.mxu0 0
    %628 = vmatmul.mubr.bf16.gmra.mrb[0].mxu0 %v434
    %v629 = vpop.f32.mrb[0].mxu0
    %v630 = vadd.f32 0.0, %v629
    %v631 = vpop.f32.mrb[0].mxu0
    %v632 = vadd.f32 0.0, %v631
    %v633 = vpop.f32.mrb[0].mxu0
    %v634 = vpop.f32.mrb[0].mxu0
    %635 = vdwg.mxu0
    %636 = vmatprep.subr.bf16.mxu0 0
    %637 = vmatpush1.bf16.msra.mxu0 %v549
    %638 = vmatprep.subr.bf16.mxu0 0
    %639 = vmatpush1.bf16.msra.mxu0 %v552
    %640 = vmatprep.subr.bf16.mxu0 0
    %641 = vmatpush1.bf16.msra.mxu0 %v555
    %642 = vmatprep.subr.bf16.mxu0 0
    %643 = vmatpush1.bf16.msra.mxu0 %v558
    %644 = vmatprep.subr.bf16.mxu0 0
    %645 = vmatpush1.bf16.msra.mxu0 %v561
    %646 = vmatprep.subr.bf16.mxu0 0
    %647 = vmatpush1.bf16.msra.mxu0 %v564
    %648 = vmatprep.subr.bf16.mxu0 0
    %649 = vmatpush1.bf16.msra.mxu0 %v567
    %650 = vmatprep.subr.bf16.mxu0 0
    %651 = vmatpush1.bf16.msra.mxu0 %v570
    %652 = vmatprep.subr.bf16.mxu0 0
    %653 = vmatpush1.bf16.msra.mxu0 0
    %654 = vmatprep.subr.bf16.mxu0 0
    %655 = vmatpush1.bf16.msra.mxu0 0
    %656 = vmatprep.subr.bf16.mxu0 0
    %657 = vmatpush1.bf16.msra.mxu0 0
    %658 = vmatprep.subr.bf16.mxu0 0
    %659 = vmatpush1.bf16.msra.mxu0 0
    %660 = vmatprep.subr.bf16.mxu0 0
    %661 = vmatpush1.bf16.msra.mxu0 0
    %662 = vmatprep.subr.bf16.mxu0 0
    %663 = vmatpush1.bf16.msra.mxu0 0
    %664 = vmatprep.subr.bf16.mxu0 0
    %665 = vmatpush1.bf16.msra.mxu0 0
    %666 = vmatprep.subr.bf16.mxu0 0
    %667 = vmatpush1.bf16.msra.mxu0 0
    %668 = vmatprep.mubr.bf16.mxu0 0
    %669 = vmatmul.mubr.bf16.gmra.mrb[0].mxu0 %v434
    %v670 = vpop.f32.mrb[0].mxu0
    %v671 = vadd.f32 0.0, %v670
    %v672 = vpop.f32.mrb[0].mxu0
    %v673 = vpop.f32.mrb[0].mxu0
    %v674 = vpop.f32.mrb[0].mxu0
    %675 = vdwg.mxu0
    %v677 = vcombine.high %v127, %v127
    %v679 = vpack.c.bf16 %v677, %v677
    %v680 = vld [vmem:[#allocation11] sm:$0xff]
    %v681 = vld [vmem:[#allocation11 + $0x8] sm:$0xf]
    %v682 = vld [vmem:[#allocation11 + $0xc] sm:$0xff]
    %v683 = vld [vmem:[#allocation11 + $0x14] sm:$0xf]
    %v684 = vld [vmem:[#allocation11 + $0x18] sm:$0xff]
    %v685 = vld [vmem:[#allocation11 + $0x20] sm:$0xf]
    %v686 = vld [vmem:[#allocation11 + $0x24] sm:$0xff]
    %v687 = vld [vmem:[#allocation11 + $0x2c] sm:$0xf]
    %v688 = vld [vmem:[#allocation11 + $0x30] sm:$0xff]
    %v689 = vld [vmem:[#allocation11 + $0x38] sm:$0xf]
    %v690 = vld [vmem:[#allocation11 + $0x3c] sm:$0xff]
    %v691 = vld [vmem:[#allocation11 + $0x44] sm:$0xf]
    %v692 = vld [vmem:[#allocation11 + $0x48] sm:$0xff]
    %v693 = vld [vmem:[#allocation11 + $0x50] sm:$0xf]
    %v694 = vld [vmem:[#allocation11 + $0x54] sm:$0xff]
    %v695 = vld [vmem:[#allocation11 + $0x5c] sm:$0xf]
    %v696 = vld [vmem:[#allocation11 + $0x60] sm:$0xff]
    %v697 = vld [vmem:[#allocation11 + $0x68] sm:$0xf]
    %v698 = vld [vmem:[#allocation11 + $0x6c] sm:$0xff]
    %v699 = vld [vmem:[#allocation11 + $0x74] sm:$0xf]
    %v700 = vld [vmem:[#allocation11 + $0x78] sm:$0xff]
    %v701 = vld [vmem:[#allocation11 + $0x80] sm:$0xf]
    %v702 = vld [vmem:[#allocation11 + $0x84] sm:$0xff]
    %v703 = vld [vmem:[#allocation11 + $0x8c] sm:$0xf]
    %v704 = vld [vmem:[#allocation11 + $0x90] sm:$0xff]
    %v705 = vld [vmem:[#allocation11 + $0x98] sm:$0xf]
    %v706 = vld [vmem:[#allocation11 + $0x9c] sm:$0xff]
    %v707 = vld [vmem:[#allocation11 + $0xa4] sm:$0xf]
    %v708 = vld [vmem:[#allocation11 + $0xa8] sm:$0xff]
    %v709 = vld [vmem:[#allocation11 + $0xb0] sm:$0xf]
    %v710 = vld [vmem:[#allocation11 + $0xb4] sm:$0xff]
    %v711 = vld [vmem:[#allocation11 + $0xbc] sm:$0xf]
    %v744 = vunpack.c.l.b16 %v680
    %v745 = vunpack.c.h.b16 %v680
    %v746 = vunpack.c.l.b16 %v681
    %v747 = vunpack.c.l.b16 %v682
    %v748 = vunpack.c.h.b16 %v682
    %v749 = vunpack.c.l.b16 %v683
    %v750 = vunpack.c.l.b16 %v684
    %v751 = vunpack.c.h.b16 %v684
    %v752 = vunpack.c.l.b16 %v685
    %v753 = vunpack.c.l.b16 %v686
    %v754 = vunpack.c.h.b16 %v686
    %v755 = vunpack.c.l.b16 %v687
    %v756 = vunpack.c.l.b16 %v688
    %v757 = vunpack.c.h.b16 %v688
    %v758 = vunpack.c.l.b16 %v689
    %v759 = vunpack.c.l.b16 %v690
    %v760 = vunpack.c.h.b16 %v690
    %v761 = vunpack.c.l.b16 %v691
    %v762 = vunpack.c.l.b16 %v692
    %v763 = vunpack.c.h.b16 %v692
    %v764 = vunpack.c.l.b16 %v693
    %v765 = vunpack.c.l.b16 %v694
    %v766 = vunpack.c.h.b16 %v694
    %v767 = vunpack.c.l.b16 %v695
    %v768 = vunpack.c.l.b16 %v696
    %v769 = vunpack.c.h.b16 %v696
    %v770 = vunpack.c.l.b16 %v697
    %v771 = vunpack.c.l.b16 %v698
    %v772 = vunpack.c.h.b16 %v698
    %v773 = vunpack.c.l.b16 %v699
    %v774 = vunpack.c.l.b16 %v700
    %v775 = vunpack.c.h.b16 %v700
    %v776 = vunpack.c.l.b16 %v701
    %v777 = vunpack.c.l.b16 %v702
    %v778 = vunpack.c.h.b16 %v702
    %v779 = vunpack.c.l.b16 %v703
    %v780 = vunpack.c.l.b16 %v704
    %v781 = vunpack.c.h.b16 %v704
    %v782 = vunpack.c.l.b16 %v705
    %v783 = vunpack.c.l.b16 %v706
    %v784 = vunpack.c.h.b16 %v706
    %v785 = vunpack.c.l.b16 %v707
    %v786 = vunpack.c.l.b16 %v708
    %v787 = vunpack.c.h.b16 %v708
    %v788 = vunpack.c.l.b16 %v709
    %v789 = vunpack.c.l.b16 %v710
    %v790 = vunpack.c.h.b16 %v710
    %v791 = vunpack.c.l.b16 %v711
    %v792 = vpack.c.b16 %v747, %v744
    %v793 = vpack.c.b16 %v748, %v745
    %v794 = vpack.c.b16 %v749, %v746
    %v795 = vpack.c.b16 %v753, %v750
    %v796 = vpack.c.b16 %v754, %v751
    %v797 = vpack.c.b16 %v755, %v752
    %v798 = vpack.c.b16 %v759, %v756
    %v799 = vpack.c.b16 %v760, %v757
    %v800 = vpack.c.b16 %v761, %v758
    %v801 = vpack.c.b16 %v765, %v762
    %v802 = vpack.c.b16 %v766, %v763
    %v803 = vpack.c.b16 %v767, %v764
    %v804 = vpack.c.b16 %v771, %v768
    %v805 = vpack.c.b16 %v772, %v769
    %v806 = vpack.c.b16 %v773, %v770
    %v807 = vpack.c.b16 %v777, %v774
    %v808 = vpack.c.b16 %v778, %v775
    %v809 = vpack.c.b16 %v779, %v776
    %v810 = vpack.c.b16 %v783, %v780
    %v811 = vpack.c.b16 %v784, %v781
    %v812 = vpack.c.b16 %v785, %v782
    %v813 = vpack.c.b16 %v789, %v786
    %v814 = vpack.c.b16 %v790, %v787
    %v815 = vpack.c.b16 %v791, %v788
    %840 = vmatprep.subr.bf16.mxu0 %v793
    %841 = vmatpush1.bf16.msra.mxu0 %v792
    %842 = vmatprep.subr.bf16.mxu0 %v796
    %843 = vmatpush1.bf16.msra.mxu0 %v795
    %844 = vmatprep.subr.bf16.mxu0 %v799
    %845 = vmatpush1.bf16.msra.mxu0 %v798
    %846 = vmatprep.subr.bf16.mxu0 %v802
    %847 = vmatpush1.bf16.msra.mxu0 %v801
    %848 = vmatprep.subr.bf16.mxu0 %v805
    %849 = vmatpush1.bf16.msra.mxu0 %v804
    %850 = vmatprep.subr.bf16.mxu0 %v808
    %851 = vmatpush1.bf16.msra.mxu0 %v807
    %852 = vmatprep.subr.bf16.mxu0 %v811
    %853 = vmatpush1.bf16.msra.mxu0 %v810
    %854 = vmatprep.subr.bf16.mxu0 %v814
    %855 = vmatpush1.bf16.msra.mxu0 %v813
    %856 = vmatprep.subr.bf16.mxu0 0
    %857 = vmatpush1.bf16.msra.mxu0 0
    %858 = vmatprep.subr.bf16.mxu0 0
    %859 = vmatpush1.bf16.msra.mxu0 0
    %860 = vmatprep.subr.bf16.mxu0 0
    %861 = vmatpush1.bf16.msra.mxu0 0
    %862 = vmatprep.subr.bf16.mxu0 0
    %863 = vmatpush1.bf16.msra.mxu0 0
    %864 = vmatprep.subr.bf16.mxu0 0
    %865 = vmatpush1.bf16.msra.mxu0 0
    %866 = vmatprep.subr.bf16.mxu0 0
    %867 = vmatpush1.bf16.msra.mxu0 0
    %868 = vmatprep.subr.bf16.mxu0 0
    %869 = vmatpush1.bf16.msra.mxu0 0
    %870 = vmatprep.subr.bf16.mxu0 0
    %871 = vmatpush1.bf16.msra.mxu0 0
    %872 = vmatprep.mubr.bf16.mxu0 0
    %873 = vmatmul.mubr.bf16.gmra.mrb[0].mxu0 %v679
    %v874 = vpop.f32.mrb[0].mxu0
    %v875 = vadd.f32 0.0, %v874
    %v876 = vpop.f32.mrb[0].mxu0
    %v877 = vadd.f32 0.0, %v876
    %v878 = vpop.f32.mrb[0].mxu0
    %v879 = vpop.f32.mrb[0].mxu0
    %880 = vdwg.mxu0
    %881 = vmatprep.subr.bf16.mxu0 0
    %882 = vmatpush1.bf16.msra.mxu0 %v794
    %883 = vmatprep.subr.bf16.mxu0 0
    %884 = vmatpush1.bf16.msra.mxu0 %v797
    %885 = vmatprep.subr.bf16.mxu0 0
    %886 = vmatpush1.bf16.msra.mxu0 %v800
    %887 = vmatprep.subr.bf16.mxu0 0
    %888 = vmatpush1.bf16.msra.mxu0 %v803
    %889 = vmatprep.subr.bf16.mxu0 0
    %890 = vmatpush1.bf16.msra.mxu0 %v806
    %891 = vmatprep.subr.bf16.mxu0 0
    %892 = vmatpush1.bf16.msra.mxu0 %v809
    %893 = vmatprep.subr.bf16.mxu0 0
    %894 = vmatpush1.bf16.msra.mxu0 %v812
    %895 = vmatprep.subr.bf16.mxu0 0
    %896 = vmatpush1.bf16.msra.mxu0 %v815
    %897 = vmatprep.subr.bf16.mxu0 0
    %898 = vmatpush1.bf16.msra.mxu0 0
    %899 = vmatprep.subr.bf16.mxu0 0
    %900 = vmatpush1.bf16.msra.mxu0 0
    %901 = vmatprep.subr.bf16.mxu0 0
    %902 = vmatpush1.bf16.msra.mxu0 0
    %903 = vmatprep.subr.bf16.mxu0 0
    %904 = vmatpush1.bf16.msra.mxu0 0
    %905 = vmatprep.subr.bf16.mxu0 0
    %906 = vmatpush1.bf16.msra.mxu0 0
    %907 = vmatprep.subr.bf16.mxu0 0
    %908 = vmatpush1.bf16.msra.mxu0 0
    %909 = vmatprep.subr.bf16.mxu0 0
    %910 = vmatpush1.bf16.msra.mxu0 0
    %911 = vmatprep.subr.bf16.mxu0 0
    %912 = vmatpush1.bf16.msra.mxu0 0
    %913 = vmatprep.mubr.bf16.mxu0 0
    %914 = vmatmul.mubr.bf16.gmra.mrb[0].mxu0 %v679
    %v915 = vpop.f32.mrb[0].mxu0
    %v916 = vadd.f32 0.0, %v915
    %v917 = vpop.f32.mrb[0].mxu0
    %v918 = vpop.f32.mrb[0].mxu0
    %v919 = vpop.f32.mrb[0].mxu0
    %920 = vdwg.mxu0
    %v921 = vld [vmem:[#allocation14 + $0x11] ss:$0 sm:$0xff]
    %v922 = vadd.f32 %v346, %v630
    %v923 = vxor.u32 %v922, 2147483648
    %v924 = vmul.f32 %v923, 1.442695
    %v925 = vpow.pop %v924
    %v926 = vadd.f32 %v925, 1.0
    %v927 = vrcp.pop %v926
    %v928 = vmul.f32 1.0, %v927
    %v929 = vadd.f32 %v348, %v632
    %v930 = vxor.u32 %v929, 2147483648
    %v931 = vmul.f32 %v930, 1.442695
    %v932 = vpow.pop %v931
    %v933 = vadd.f32 %v932, 1.0
    %v934 = vrcp.pop %v933
    %v935 = vmul.f32 1.0, %v934
    %v936 = vadd.f32 %v671, %v921
    %v937 = vmul.f32 %v928, %v936
    %v938 = vadd.f32 %v387, %v937
    %v939 = vtanh.pop %v938
    %v940 = vsub.f32 1.0, %v935
    %v941 = vmul.f32 %v940, %v939
    %v942 = vmul.f32 %v935, %v127
    %v943 = vadd.f32 %v941, %v942
    %v944 = vld [vmem:[#allocation14 + $0x29] ss:$0 sm:$0xff]
    %v945 = vadd.f32 %v389, %v875
    %v946 = vxor.u32 %v945, 2147483648
    %v947 = vmul.f32 %v946, 1.442695
    %v948 = vpow.pop %v947
    %v949 = vadd.f32 %v948, 1.0
    %v950 = vrcp.pop %v949
    %v951 = vmul.f32 1.0, %v950
    %v952 = vadd.f32 %v428, %v877
    %v953 = vxor.u32 %v952, 2147483648
    %v954 = vmul.f32 %v953, 1.442695
    %v955 = vpow.pop %v954
    %v956 = vadd.f32 %v955, 1.0
    %v957 = vrcp.pop %v956
    %v958 = vmul.f32 1.0, %v957
    %v959 = vadd.f32 %v916, %v944
    %v960 = vmul.f32 %v951, %v959
    %v961 = vadd.f32 %v430, %v960
    %v962 = vtanh.pop %v961
    %v963 = vsub.f32 1.0, %v958
    %v964 = vmul.f32 %v963, %v962
    %v965 = vmul.f32 %v958, %v677
    %v966 = vadd.f32 %v964, %v965
    %v969 = vcombine.low %v943, %v966
    %971 = vst [vmem:[#allocation2] sm:$0xff] %v969
    %v972 = vpack.c.bf16 %v943, %v943
    %v973 = vpack.c.bf16 %v966, %v966
    %v974 = vld [vmem:[#allocation12] sm:$0xff]
    %v975 = vld [vmem:[#allocation12 + $0x8] sm:$0xff]
    %v976 = vld [vmem:[#allocation12 + $0x10] sm:$0xff]
    %v977 = vld [vmem:[#allocation12 + $0x18] sm:$0xff]
    %v978 = vld [vmem:[#allocation12 + $0x20] sm:$0xff]
    %v979 = vld [vmem:[#allocation12 + $0x28] sm:$0xff]
    %v980 = vld [vmem:[#allocation12 + $0x30] sm:$0xff]
    %v981 = vld [vmem:[#allocation12 + $0x38] sm:$0xff]
    %v982 = vld [vmem:[#allocation12 + $0x40] sm:$0xff]
    %v983 = vld [vmem:[#allocation12 + $0x48] sm:$0xff]
    %v984 = vld [vmem:[#allocation12 + $0x50] sm:$0xff]
    %v985 = vld [vmem:[#allocation12 + $0x58] sm:$0xff]
    %v986 = vld [vmem:[#allocation12 + $0x60] sm:$0xff]
    %v987 = vld [vmem:[#allocation12 + $0x68] sm:$0xff]
    %v988 = vld [vmem:[#allocation12 + $0x70] sm:$0xff]
    %v989 = vld [vmem:[#allocation12 + $0x78] sm:$0xff]
    %v990 = vld [vmem:[#allocation12 + $0x80] sm:$0xff]
    %v991 = vld [vmem:[#allocation12 + $0x88] sm:$0xff]
    %v992 = vld [vmem:[#allocation12 + $0x90] sm:$0xff]
    %v993 = vld [vmem:[#allocation12 + $0x98] sm:$0xff]
    %v994 = vld [vmem:[#allocation12 + $0xa0] sm:$0xff]
    %v995 = vld [vmem:[#allocation12 + $0xa8] sm:$0xff]
    %v996 = vld [vmem:[#allocation12 + $0xb0] sm:$0xff]
    %v997 = vld [vmem:[#allocation12 + $0xb8] sm:$0xff]
    %v998 = vld [vmem:[#allocation12 + $0xc0] sm:$0xff]
    %v999 = vld [vmem:[#allocation12 + $0xc8] sm:$0xff]
    %v1000 = vld [vmem:[#allocation12 + $0xd0] sm:$0xff]
    %v1001 = vld [vmem:[#allocation12 + $0xd8] sm:$0xff]
    %v1002 = vld [vmem:[#allocation12 + $0xe0] sm:$0xff]
    %v1003 = vld [vmem:[#allocation12 + $0xe8] sm:$0xff]
    %v1004 = vld [vmem:[#allocation12 + $0xf0] sm:$0xff]
    %v1005 = vld [vmem:[#allocation12 + $0xf8] sm:$0xff]
    %s1006 = scalar_lea.vmem [#allocation14], 2
    %v1007 = vld [vmem:[%s1006] ss:$8 sm:$0x3]
    %v1009 = vlaneseq
    %v1010 = vshrl.u32 %v1009, 7
    %v1011 = vsub.s32 0, %v1010
    %v1012 = vrot.slane %v1007, %v1011
    %v1013 = vlaneseq
    %v1014 = vshrl.u32 %v1013, 7
    %v1015 = vsub.s32 1, %v1014
    %v1016 = vrot.slane %v1007, %v1015
    %v1051 = vunpack.c.l.b16 %v974
    %v1052 = vunpack.c.h.b16 %v974
    %v1053 = vunpack.c.l.b16 %v975
    %v1054 = vunpack.c.h.b16 %v975
    %v1055 = vunpack.c.l.b16 %v976
    %v1056 = vunpack.c.h.b16 %v976
    %v1057 = vunpack.c.l.b16 %v977
    %v1058 = vunpack.c.h.b16 %v977
    %v1059 = vunpack.c.l.b16 %v978
    %v1060 = vunpack.c.h.b16 %v978
    %v1061 = vunpack.c.l.b16 %v979
    %v1062 = vunpack.c.h.b16 %v979
    %v1063 = vunpack.c.l.b16 %v980
    %v1064 = vunpack.c.h.b16 %v980
    %v1065 = vunpack.c.l.b16 %v981
    %v1066 = vunpack.c.h.b16 %v981
    %v1067 = vunpack.c.l.b16 %v982
    %v1068 = vunpack.c.h.b16 %v982
    %v1069 = vunpack.c.l.b16 %v983
    %v1070 = vunpack.c.h.b16 %v983
    %v1071 = vunpack.c.l.b16 %v984
    %v1072 = vunpack.c.h.b16 %v984
    %v1073 = vunpack.c.l.b16 %v985
    %v1074 = vunpack.c.h.b16 %v985
    %v1075 = vunpack.c.l.b16 %v986
    %v1076 = vunpack.c.h.b16 %v986
    %v1077 = vunpack.c.l.b16 %v987
    %v1078 = vunpack.c.h.b16 %v987
    %v1079 = vunpack.c.l.b16 %v988
    %v1080 = vunpack.c.h.b16 %v988
    %v1081 = vunpack.c.l.b16 %v989
    %v1082 = vunpack.c.h.b16 %v989
    %v1083 = vunpack.c.l.b16 %v990
    %v1084 = vunpack.c.h.b16 %v990
    %v1085 = vunpack.c.l.b16 %v991
    %v1086 = vunpack.c.h.b16 %v991
    %v1087 = vunpack.c.l.b16 %v992
    %v1088 = vunpack.c.h.b16 %v992
    %v1089 = vunpack.c.l.b16 %v993
    %v1090 = vunpack.c.h.b16 %v993
    %v1091 = vunpack.c.l.b16 %v994
    %v1092 = vunpack.c.h.b16 %v994
    %v1093 = vunpack.c.l.b16 %v995
    %v1094 = vunpack.c.h.b16 %v995
    %v1095 = vunpack.c.l.b16 %v996
    %v1096 = vunpack.c.h.b16 %v996
    %v1097 = vunpack.c.l.b16 %v997
    %v1098 = vunpack.c.h.b16 %v997
    %v1099 = vunpack.c.l.b16 %v998
    %v1100 = vunpack.c.h.b16 %v998
    %v1101 = vunpack.c.l.b16 %v999
    %v1102 = vunpack.c.h.b16 %v999
    %v1103 = vunpack.c.l.b16 %v1000
    %v1104 = vunpack.c.h.b16 %v1000
    %v1105 = vunpack.c.l.b16 %v1001
    %v1106 = vunpack.c.h.b16 %v1001
    %v1107 = vunpack.c.l.b16 %v1002
    %v1108 = vunpack.c.h.b16 %v1002
    %v1109 = vunpack.c.l.b16 %v1003
    %v1110 = vunpack.c.h.b16 %v1003
    %v1111 = vunpack.c.l.b16 %v1004
    %v1112 = vunpack.c.h.b16 %v1004
    %v1113 = vunpack.c.l.b16 %v1005
    %v1114 = vunpack.c.h.b16 %v1005
    %v1115 = vpack.c.b16 %v1053, %v1051
    %v1116 = vpack.c.b16 %v1054, %v1052
    %v1117 = vpack.c.b16 %v1057, %v1055
    %v1118 = vpack.c.b16 %v1058, %v1056
    %v1119 = vpack.c.b16 %v1061, %v1059
    %v1120 = vpack.c.b16 %v1062, %v1060
    %v1121 = vpack.c.b16 %v1065, %v1063
    %v1122 = vpack.c.b16 %v1066, %v1064
    %v1123 = vpack.c.b16 %v1069, %v1067
    %v1124 = vpack.c.b16 %v1070, %v1068
    %v1125 = vpack.c.b16 %v1073, %v1071
    %v1126 = vpack.c.b16 %v1074, %v1072
    %v1127 = vpack.c.b16 %v1077, %v1075
    %v1128 = vpack.c.b16 %v1078, %v1076
    %v1129 = vpack.c.b16 %v1081, %v1079
    %v1130 = vpack.c.b16 %v1082, %v1080
    %v1131 = vpack.c.b16 %v1085, %v1083
    %v1132 = vpack.c.b16 %v1086, %v1084
    %v1133 = vpack.c.b16 %v1089, %v1087
    %v1134 = vpack.c.b16 %v1090, %v1088
    %v1135 = vpack.c.b16 %v1093, %v1091
    %v1136 = vpack.c.b16 %v1094, %v1092
    %v1137 = vpack.c.b16 %v1097, %v1095
    %v1138 = vpack.c.b16 %v1098, %v1096
    %v1139 = vpack.c.b16 %v1101, %v1099
    %v1140 = vpack.c.b16 %v1102, %v1100
    %v1141 = vpack.c.b16 %v1105, %v1103
    %v1142 = vpack.c.b16 %v1106, %v1104
    %v1143 = vpack.c.b16 %v1109, %v1107
    %v1144 = vpack.c.b16 %v1110, %v1108
    %v1145 = vpack.c.b16 %v1113, %v1111
    %v1146 = vpack.c.b16 %v1114, %v1112
    %1179 = vmatprep.subr.bf16.mxu0 %v1116
    %1180 = vmatpush1.bf16.msra.mxu0 %v1115
    %1181 = vmatprep.subr.bf16.mxu0 %v1118
    %1182 = vmatpush1.bf16.msra.mxu0 %v1117
    %1183 = vmatprep.subr.bf16.mxu0 %v1120
    %1184 = vmatpush1.bf16.msra.mxu0 %v1119
    %1185 = vmatprep.subr.bf16.mxu0 %v1122
    %1186 = vmatpush1.bf16.msra.mxu0 %v1121
    %1187 = vmatprep.subr.bf16.mxu0 %v1124
    %1188 = vmatpush1.bf16.msra.mxu0 %v1123
    %1189 = vmatprep.subr.bf16.mxu0 %v1126
    %1190 = vmatpush1.bf16.msra.mxu0 %v1125
    %1191 = vmatprep.subr.bf16.mxu0 %v1128
    %1192 = vmatpush1.bf16.msra.mxu0 %v1127
    %1193 = vmatprep.subr.bf16.mxu0 %v1130
    %1194 = vmatpush1.bf16.msra.mxu0 %v1129
    %1195 = vmatprep.subr.bf16.mxu0 %v1132
    %1196 = vmatpush1.bf16.msra.mxu0 %v1131
    %1197 = vmatprep.subr.bf16.mxu0 %v1134
    %1198 = vmatpush1.bf16.msra.mxu0 %v1133
    %1199 = vmatprep.subr.bf16.mxu0 %v1136
    %1200 = vmatpush1.bf16.msra.mxu0 %v1135
    %1201 = vmatprep.subr.bf16.mxu0 %v1138
    %1202 = vmatpush1.bf16.msra.mxu0 %v1137
    %1203 = vmatprep.subr.bf16.mxu0 %v1140
    %1204 = vmatpush1.bf16.msra.mxu0 %v1139
    %1205 = vmatprep.subr.bf16.mxu0 %v1142
    %1206 = vmatpush1.bf16.msra.mxu0 %v1141
    %1207 = vmatprep.subr.bf16.mxu0 %v1144
    %1208 = vmatpush1.bf16.msra.mxu0 %v1143
    %1209 = vmatprep.subr.bf16.mxu0 %v1146
    %1210 = vmatpush1.bf16.msra.mxu0 %v1145
    %1211 = vmatprep.mubr.bf16.mxu0 %v973
    %1212 = vmatmul.mubr.bf16.gmra.mrb[0].mxu0 %v972
    %v1213 = vpop.f32.mrb[0].mxu0
    %v1214 = vadd.f32 %v1012, %v1213
    %v1215 = vpop.f32.mrb[0].mxu0
    %v1216 = vadd.f32 %v1016, %v1215
    %v1217 = vpop.f32.mrb[0].mxu0
    %v1218 = vpop.f32.mrb[0].mxu0
    %1219 = vdwg.mxu0
    %v1220 = vld [vmem:[%s2] sm:$0xf]
    %vm1221 = vcmp.gt.f32.partialorder %v1220, 0.5
    %v1222 = vsel %vm1221, %v1214, -3.4028235e+38
    %vm1223 = vcmask 1043456
    %v1224 = vsel %vm1223, %v1222, -inf
    %1225 = vmax.xlane.f32.xlu0 %v1224
    %v1226 = vpop.xlane.xlu0 %1225
    %v1227 = vsub.f32 %v1222, %v1226
    %v1228 = vmul.f32 %v1227, 1.442695
    %v1229 = vpow.pop %v1228
    %v1230 = vsel %vm1223, %v1229, 0.0
    %1231 = vadd.xlane.f32.xlu0 %v1230
    %v1232 = vpop.xlane.xlu0 %1231
    %v1233 = vlog2.pop %v1232
    %v1234 = vmul.f32 %v1233, 0.6931472
    %v1235 = vsub.f32 %v1227, %v1234
    %v1236 = vmul.f32 %v1235, 1.442695
    %v1237 = vpow.pop %v1236
    %v1238 = vmul.f32 %v1237, %v1235
    %v1239 = vsel %vm1221, %v1238, 0.0
    %v1240 = vsel %vm1223, %v1239, 0.0
    %1241 = vadd.xlane.f32.xlu0 %v1240
    %v1242 = vpop.xlane.xlu0 %1241
    %v1243 = vsub.f32 0.0, %v1242
    %1244 = vst [vmem:[#allocation15] sm:$0xff] %v969
    %1245 = vst [vmem:[#allocation15 + $0x8] sm:$0xf] %v1222
    %1246 = vst [vmem:[#allocation15 + $0xc] sm:$0xf] %v1237
    %1247 = vst [vmem:[#allocation15 + $0x10] sm:$0xf] %v1235
    %v1248 = vlaneseq
    %v1249 = vand.u32 %v1248, 127
    %vm1250 = vcmp.eq.s32.totalorder %v1249, 0
    %v1251 = vsel %vm1250, %v1243, 0.0
    %1252 = vst [vmem:[#allocation15 + $0x14] sm:$0xf] %v1251
    %1253 = vst [vmem:[#allocation15 + $0x18] sm:$0xf] %v1216
    // Predicated region
    $region66: #{tpu_custom_call.1} parent=1 // pred_check
      _
    $region67: #{tpu_custom_call.1} parent=1 // pred_check_branch
      %1255 = sbr.rel (0) target = $region69
    $region68: #{tpu_custom_call.1} parent=1 // pred_region
      %s1257 = ssub.s32 448, 448
      %1258 = vsyncadd [#allocation5], %s1257
      %s1260 = sshll.u32 [#allocation15], 4
      %s1261 = int_to_ptr.vmem [resolvable:$true] %s1260
      %1263 = dma.vmem_to_hbm [thread:$0]  %s1261, 448, %s8, [#allocation5]
    $region69: #{tpu_custom_call.1} parent=1 // pred_fallthru
      _
    // Predicated region
    $region70: #{tpu_custom_call.1} parent=1 // pred_check
      _
    $region71: #{tpu_custom_call.1} parent=1 // pred_check_branch
      %1265 = sbr.rel (0) target = $region73
    $region72: #{tpu_custom_call.1} parent=1 // pred_region
      %1266 = dma.done [#allocation5], 448
    $region73: #{tpu_custom_call.1} parent=1 // pred_fallthru
      _
    %1267 = vsyncpa [#allocation4], 1
    %1268 = vsyncpa [#allocation7], 1
    %1269 = vsyncpa [#allocation10], 1
    %1270 = vsyncpa [#allocation13], 1
    %1271 = vsyncpa [#allocation5], 1

</llo_original>
